<compile_context>
chip_gen: v5e
topology: v5e:2x2
jax: 0.10.0
libtpu: 0.0.40
codegen_flags: <defaults>
</compile_context>

<pallas_src>
import functools

import jax
import jax.numpy as jnp
from jax.experimental import pallas as pl
from jax.experimental.pallas import tpu as pltpu

# ----------------------------- config (config.model.gen_model.*) -------------
SAMPLE_RATE = 16000
N_MFCC = 16
MELKWARGS = dict(
    n_fft=128,
    hop_length=64,
    n_mels=32,
    f_min=0.0,
    f_max=None,          # -> sample_rate / 2
    power=2.0,
)
TOP_DB = 80.0            # torchaudio MFCC default (AmplitudeToDB("power", 80.0))
AMIN = 1e-10

N_FFT = MELKWARGS["n_fft"]          # 128
HOP = MELKWARGS["hop_length"]       # 64
N_MELS = MELKWARGS["n_mels"]        # 32
N_FREQS = N_FFT // 2 + 1            # 65
N_FREQ_PAD = 128                    # freq axis zero-padded to a full lane width
LANE = 128


# ----------------------------- parameter construction (glue, plain JAX) ------
def hann_window(n_fft):
    n = jnp.arange(n_fft, dtype=jnp.float32)
    return 0.5 * (1.0 - jnp.cos(2.0 * jnp.pi * n / n_fft))   # periodic Hann


def fused_dft_matrix():
    """Fused, freq-padded windowed rDFT matrix: (2*N_FREQ_PAD, n_fft).

    Rows [0, 65)            : real part (Hann-windowed cos)
    Rows [65, 128)          : zero padding
    Rows [128, 193)         : imag part (Hann-windowed -sin)
    Rows [193, 256)         : zero padding
    """
    win = hann_window(N_FFT)
    k = jnp.arange(N_FREQS, dtype=jnp.float32)[:, None]      # (65, 1)
    n = jnp.arange(N_FFT, dtype=jnp.float32)[None, :]        # (1, 128)
    ang = 2.0 * jnp.pi * k * n / N_FFT
    wr = jnp.cos(ang) * win[None, :]                         # (65, 128)
    wi = -jnp.sin(ang) * win[None, :]                        # (65, 128)
    pad = ((0, N_FREQ_PAD - N_FREQS), (0, 0))
    return jnp.concatenate([jnp.pad(wr, pad), jnp.pad(wi, pad)],
                           axis=0).astype(jnp.float32)       # (256, 128)


def mel_filterbank_t(f_max):
    """torchaudio.functional.melscale_fbanks (htk, norm=None), transposed and
    freq-padded -> (n_mels, N_FREQ_PAD)."""
    all_freqs = jnp.linspace(0.0, SAMPLE_RATE // 2, N_FREQS)
    hz_to_mel = lambda f: 2595.0 * jnp.log10(1.0 + f / 700.0)
    m_min, m_max = hz_to_mel(MELKWARGS["f_min"]), hz_to_mel(f_max)
    m_pts = jnp.linspace(m_min, m_max, N_MELS + 2)
    f_pts = 700.0 * (10.0 ** (m_pts / 2595.0) - 1.0)
    f_diff = f_pts[1:] - f_pts[:-1]                          # (n_mels + 1,)
    slopes = f_pts[None, :] - all_freqs[:, None]             # (n_freqs, n_mels + 2)
    down = (-1.0 * slopes[:, :-2]) / f_diff[:-1]
    up = slopes[:, 2:] / f_diff[1:]
    fb = jnp.maximum(0.0, jnp.minimum(down, up))             # (n_freqs, n_mels)
    fb_t = fb.T                                              # (n_mels, n_freqs)
    return jnp.pad(fb_t, ((0, 0), (0, N_FREQ_PAD - N_FREQS))).astype(jnp.float32)


def dct_matrix_t():
    """torchaudio.functional.create_dct (norm='ortho'), transposed -> (n_mfcc, n_mels)."""
    n = jnp.arange(N_MELS, dtype=jnp.float32)[:, None]
    k = jnp.arange(N_MFCC, dtype=jnp.float32)[None, :]
    dct = jnp.cos(jnp.pi / N_MELS * (n + 0.5) * k) * jnp.sqrt(2.0 / N_MELS)
    dct = dct.at[:, 0].multiply(1.0 / jnp.sqrt(2.0))         # (n_mels, n_mfcc)
    return dct.T.astype(jnp.float32)                         # (n_mfcc, n_mels)


# ----------------------------- Pallas kernel ---------------------------------
def _mfcc_kernel(frames_ref, w_ref, fb_ref, dct_ref, out_ref, db_buf, max_sc,
                 *, t_real, t_tile, n_t):
    """Grid = (batch, time_tile).  Feature-major everywhere.

    frames_ref: (1, n_fft, t_tile)          w_ref:   (2*N_FREQ_PAD, n_fft)
    fb_ref:     (n_mels, N_FREQ_PAD)        dct_ref: (n_mfcc, n_mels)
    out_ref:    (1, n_mfcc, T_pad)          (written on the last time tile)
    db_buf:     VMEM (n_t, n_mels, t_tile)  per-tile dB staging
    max_sc:     VMEM (1, 1)                 running per-spectrogram max(dB)
    """
    t = pl.program_id(1)

    @pl.when(t == 0)
    def _():
        max_sc[...] = jnp.full_like(max_sc, -jnp.inf)

    fr = frames_ref[0]                                       # (n_fft, t_tile)

    # Fused windowed rDFT: one (256, 128) x (128, t_tile) matmul; rows [0,128)
    # are the (freq-padded) real part, rows [128,256) the imaginary part.
    s = jnp.dot(w_ref[...], fr,
                preferred_element_type=jnp.float32,
                precision=jax.lax.Precision.HIGHEST)         # (256, t_tile)
    re = s[:N_FREQ_PAD]
    im = s[N_FREQ_PAD:]
    power = re * re + im * im                                # (128, t_tile)

    # Mel filterbank (DEFAULT precision: bf16 operands, f32 accumulate).
    mel = jnp.dot(fb_ref[...], power,
                  preferred_element_type=jnp.float32)        # (n_mels, t_tile)

    # AmplitudeToDB("power"): 10*log10(clamp(x, amin)); top_db clamp is applied
    # after the per-spectrogram max is known (last tile).
    db = 10.0 * jnp.log10(jnp.maximum(mel, AMIN))

    # Running max over real (non time-padded) columns only.
    col = t * t_tile + jax.lax.broadcasted_iota(jnp.int32, db.shape, 1)
    tile_max = jnp.max(jnp.where(col < t_real, db, -jnp.inf))
    max_sc[...] = jnp.maximum(max_sc[...], tile_max)

    db_buf[t] = db

    @pl.when(t == n_t - 1)
    def _():
        floor = max_sc[...] - TOP_DB                         # (1, 1), broadcasts
        db_all = jnp.concatenate(
            [jnp.maximum(db_buf[tt], floor) for tt in range(n_t)],
            axis=-1)                                         # (n_mels, T_pad)
        # DCT-II (ortho); tiny matmul, keep full precision.
        out_ref[0] = jnp.dot(dct_ref[...], db_all,
                             preferred_element_type=jnp.float32,
                             precision=jax.lax.Precision.HIGHEST)  # (n_mfcc, T_pad)


def mfcc_pallas(wav, *, t_tile=128):
    """wav: (B, L) float32  ->  mfcc: (B, n_mfcc, T) float32.

    t_tile: time-tile (lane) width; 128 works everywhere, 256 best matches the
    256-wide MXU on v6e/v7x when T is large.
    """
    B, L = wav.shape
    f_max = MELKWARGS["f_max"] if MELKWARGS["f_max"] is not None else SAMPLE_RATE / 2.0
    T = 1 + L // HOP                                         # center=True
    t_tile = max(LANE, (t_tile // LANE) * LANE)
    T_pad = pl.cdiv(T, t_tile) * t_tile
    n_t = T_pad // t_tile

    # Framing (glue): center reflect padding + feature-major strided gather,
    # time axis zero-padded to a lane-aligned multiple of t_tile.
    # TODO(synk): frames duplicate each sample 2x (hop = n_fft/2); de-duplicated
    # in-kernel framing needs overlapping windows that BlockSpec can't express.
    pad = N_FFT // 2
    wav_p = jnp.pad(wav, ((0, 0), (pad, pad)), mode="reflect")
    idx = jnp.arange(N_FFT)[:, None] + jnp.arange(T)[None, :] * HOP
    frames_fm = wav_p[:, idx].astype(jnp.float32)            # (B, n_fft, T)
    frames_fm = jnp.pad(frames_fm, ((0, 0), (0, 0), (0, T_pad - T)))

    w = fused_dft_matrix()                                   # (256, 128)
    fb_t = mel_filterbank_t(f_max)                           # (32, 128)
    dct_t = dct_matrix_t()                                   # (16, 32)

    kernel = functools.partial(_mfcc_kernel, t_real=T, t_tile=t_tile, n_t=n_t)

    out = pl.pallas_call(
        kernel,
        out_shape=jax.ShapeDtypeStruct((B, N_MFCC, T_pad), jnp.float32),
        grid_spec=pltpu.PrefetchScalarGridSpec(
            num_scalar_prefetch=0,
            grid=(B, n_t),
            in_specs=[
                pl.BlockSpec((1, N_FFT, t_tile), lambda b, t: (b, 0, t)),
                pl.BlockSpec((2 * N_FREQ_PAD, N_FFT), lambda b, t: (0, 0)),
                pl.BlockSpec((N_MELS, N_FREQ_PAD), lambda b, t: (0, 0)),
                pl.BlockSpec((N_MFCC, N_MELS), lambda b, t: (0, 0)),
            ],
            out_specs=pl.BlockSpec((1, N_MFCC, T_pad), lambda b, t: (b, 0, 0)),
            scratch_shapes=[
                pltpu.VMEM((n_t, N_MELS, t_tile), jnp.float32),
                pltpu.VMEM((1, 1), jnp.float32),
            ],
        ),
        compiler_params=pltpu.CompilerParams(
            dimension_semantics=("parallel", "arbitrary")),
    )(frames_fm, w, fb_t, dct_t)

    # Already in torchaudio's (..., n_mfcc, time) layout; drop the time padding.
    return out[:, :, :T]


# ----------------------------- pure-JAX reference (for correctness check) ----
def mfcc_reference(wav):
    f_max = MELKWARGS["f_max"] if MELKWARGS["f_max"] is not None else SAMPLE_RATE / 2.0
    B, L = wav.shape
    T = 1 + L // HOP
    pad = N_FFT // 2
    wav_p = jnp.pad(wav, ((0, 0), (pad, pad)), mode="reflect")
    idx = jnp.arange(T)[:, None] * HOP + jnp.arange(N_FFT)[None, :]
    frames = wav_p[:, idx]                                   # (B, T, n_fft)

    w = fused_dft_matrix()
    wr = w[:N_FREQS]                                         # (65, n_fft)
    wi = w[N_FREQ_PAD:N_FREQ_PAD + N_FREQS]                  # (65, n_fft)
    fb = mel_filterbank_t(f_max)[:, :N_FREQS]                # (32, 65)
    dct_t = dct_matrix_t()                                   # (16, 32)

    hp = dict(precision=jax.lax.Precision.HIGHEST)
    re = jnp.einsum("btn,fn->btf", frames, wr, **hp)
    im = jnp.einsum("btn,fn->btf", frames, wi, **hp)
    power = re * re + im * im
    mel = jnp.einsum("btf,mf->btm", power, fb, **hp)
    db = 10.0 * jnp.log10(jnp.maximum(mel, AMIN))
    db = jnp.maximum(db, jnp.max(db, axis=(1, 2), keepdims=True) - TOP_DB)
    mfcc = jnp.einsum("btm,km->btk", db, dct_t, **hp)
    return jnp.transpose(mfcc, (0, 2, 1))                    # (B, n_mfcc, T)


# ----------------------------- main ------------------------------------------
if __name__ == "__main__":
    key = jax.random.PRNGKey(0)
    B, L = 2, 8192                     # ~0.5 s of 16 kHz audio -> T = 129
    wav = jax.random.normal(key, (B, L), dtype=jnp.float32)

    out = jax.jit(mfcc_pallas)(wav)
    out = jax.block_until_ready(out)

    ref = mfcc_reference(wav)
    T = 1 + L // HOP
    assert out.shape == (B, N_MFCC, T), out.shape
    max_err = float(jnp.max(jnp.abs(out - ref)))
    assert jnp.allclose(out, ref, rtol=2e-2, atol=5e-2), f"mismatch, max_err={max_err}"

    print("KERNEL_OK")
</pallas_src>

<mosaic_0001>
module attributes {stable_mosaic.version = 11 : i64} {
  func.func @_mfcc_kernel(%arg0: i32, %arg1: i32, %arg2: memref<1x128x128xf32, #tpu.memory_space<vmem>>, %arg3: memref<256x128xf32, #tpu.memory_space<vmem>>, %arg4: memref<32x128xf32, #tpu.memory_space<vmem>>, %arg5: memref<16x32xf32, #tpu.memory_space<vmem>>, %arg6: memref<1x16x256xf32, #tpu.memory_space<vmem>>, %arg7: memref<2x32x128xf32, #tpu.memory_space<vmem>>, %arg8: memref<1x1xf32, #tpu.memory_space<vmem>>) attributes {dimension_semantics = [#tpu.dimension_semantics<parallel>, #tpu.dimension_semantics<arbitrary>], iteration_bounds = array<i64: 2, 2>, scalar_prefetch = 0 : i64, scratch_operands = 2 : i64, tpu.core_type = #tpu.core_type<tc>, window_params = [{transform_indices = @transform_0, window_bounds = array<i64: 1, 128, 128>}, {pipeline_mode = #tpu.pipeline_mode<synchronous>, transform_indices = @transform_1, window_bounds = array<i64: 256, 128>}, {pipeline_mode = #tpu.pipeline_mode<synchronous>, transform_indices = @transform_2, window_bounds = array<i64: 32, 128>}, {pipeline_mode = #tpu.pipeline_mode<synchronous>, transform_indices = @transform_3, window_bounds = array<i64: 16, 32>}, {transform_indices = @transform_4, window_bounds = array<i64: 1, 16, 256>}]} {
    %c0_i32 = arith.constant 0 : i32
    %0 = arith.cmpi eq, %arg1, %c0_i32 : i32
    %1 = arith.extui %0 : i1 to i32
    %c0_i32_0 = arith.constant 0 : i32
    %2 = arith.cmpi ne, %1, %c0_i32_0 : i32
    scf.if %2 {
      %cst_20 = arith.constant 0xFF800000 : f32
      %44 = vector.broadcast %cst_20 : f32 to vector<1x1xf32>
      %c0_21 = arith.constant 0 : index
      %c0_22 = arith.constant 0 : index
      %45 = vector.load %arg8[%c0_21, %c0_22] : memref<1x1xf32, #tpu.memory_space<vmem>>, vector<1x1xf32>
      tpu.vector_store %arg8[%c0_21, %c0_22], %44 {strides = array<i32>} : memref<1x1xf32, #tpu.memory_space<vmem>>, vector<1x1xf32>,
    } else {
    }
    %c0 = arith.constant 0 : index
    %c0_1 = arith.constant 0 : index
    %c0_2 = arith.constant 0 : index
    %3 = vector.load %arg2[%c0, %c0_1, %c0_2] : memref<1x128x128xf32, #tpu.memory_space<vmem>>, vector<1x128x128xf32>
    %4 = vector.shape_cast %3 : vector<1x128x128xf32> to vector<128x128xf32>
    %c0_3 = arith.constant 0 : index
    %c0_4 = arith.constant 0 : index
    %5 = vector.load %arg3[%c0_3, %c0_4] : memref<256x128xf32, #tpu.memory_space<vmem>>, vector<256x128xf32>
    %cst = arith.constant dense<0.000000e+00> : vector<256x128xf32>
    %6 = tpu.matmul %5, %4, %cst {dimension_numbers = #tpu.dot_dimension_numbers<[1], [0], [0], [1], [0, 0, 1, 1], [], []>, precision = #tpu.contract_precision<fp32>} : vector<256x128xf32>, vector<128x128xf32>, vector<256x128xf32> -> vector<256x128xf32>
    %7 = vector.extract_strided_slice %6 {offsets = [0, 0], sizes = [128, 128], strides = [1, 1]} : vector<256x128xf32> to vector<128x128xf32>
    %8 = vector.extract_strided_slice %6 {offsets = [128, 0], sizes = [128, 128], strides = [1, 1]} : vector<256x128xf32> to vector<128x128xf32>
    %9 = arith.mulf %7, %7 : vector<128x128xf32>
    %10 = arith.mulf %8, %8 : vector<128x128xf32>
    %11 = arith.addf %9, %10 : vector<128x128xf32>
    %c0_5 = arith.constant 0 : index
    %c0_6 = arith.constant 0 : index
    %12 = vector.load %arg4[%c0_5, %c0_6] : memref<32x128xf32, #tpu.memory_space<vmem>>, vector<32x128xf32>
    %cst_7 = arith.constant dense<0.000000e+00> : vector<32x128xf32>
    %13 = tpu.matmul %12, %11, %cst_7 {dimension_numbers = #tpu.dot_dimension_numbers<[1], [0], [0], [1], [0, 0, 1, 1], [], []>} : vector<32x128xf32>, vector<128x128xf32>, vector<32x128xf32> -> vector<32x128xf32>
    %cst_8 = arith.constant 1.000000e-10 : f32
    %14 = vector.broadcast %cst_8 : f32 to vector<32x128xf32>
    %15 = arith.maximumf %13, %14 : vector<32x128xf32>
    %16 = math.log %15 : vector<32x128xf32>
    %cst_9 = arith.constant 0.434294492 : f32
    %17 = vector.broadcast %cst_9 : f32 to vector<32x128xf32>
    %18 = arith.mulf %16, %17 : vector<32x128xf32>
    %cst_10 = arith.constant 1.000000e+01 : f32
    %19 = vector.broadcast %cst_10 : f32 to vector<32x128xf32>
    %20 = arith.mulf %19, %18 : vector<32x128xf32>
    %c128_i32 = arith.constant 128 : i32
    %21 = arith.muli %arg1, %c128_i32 : i32
    %22 = tpu.iota {dimensions = array<i32: 1>} : vector<32x128xi32>
    %23 = vector.broadcast %21 : i32 to vector<32x128xi32>
    %24 = arith.addi %23, %22 : vector<32x128xi32>
    %c129_i32 = arith.constant 129 : i32
    %25 = vector.broadcast %c129_i32 : i32 to vector<32x128xi32>
    %26 = arith.cmpi slt, %24, %25 : vector<32x128xi32>
    %cst_11 = arith.constant 0xFF800000 : f32
    %27 = vector.broadcast %cst_11 : f32 to vector<32x128xf32>
    %28 = arith.select %26, %20, %27 : vector<32x128xi1>, vector<32x128xf32>
    %29 = vector.shape_cast %28 : vector<32x128xf32> to vector<1x32x128xf32>
    %cst_12 = arith.constant dense<0xFF800000> : vector<1xf32>
    %30 = vector.multi_reduction <maximumf>, %29, %cst_12 [1, 2] : vector<1x32x128xf32> to vector<1xf32>
    %31 = vector.shape_cast %30 : vector<1xf32> to vector<1x1x1xf32>
    %32 = vector.extract %31[0, 0, 0] : f32 from vector<1x1x1xf32>
    %c0_13 = arith.constant 0 : index
    %c0_14 = arith.constant 0 : index
    %33 = vector.load %arg8[%c0_13, %c0_14] : memref<1x1xf32, #tpu.memory_space<vmem>>, vector<1x1xf32>
    %34 = vector.broadcast %32 : f32 to vector<1x1xf32>
    %35 = arith.maximumf %33, %34 : vector<1x1xf32>
    %c0_15 = arith.constant 0 : index
    %c0_16 = arith.constant 0 : index
    %36 = vector.load %arg8[%c0_15, %c0_16] : memref<1x1xf32, #tpu.memory_space<vmem>>, vector<1x1xf32>
    tpu.vector_store %arg8[%c0_15, %c0_16], %35 {strides = array<i32>} : memref<1x1xf32, #tpu.memory_space<vmem>>, vector<1x1xf32>,
    %37 = arith.index_cast %arg1 : i32 to index
    %c0_17 = arith.constant 0 : index
    %c0_18 = arith.constant 0 : index
    %38 = vector.load %arg7[%37, %c0_17, %c0_18] : memref<2x32x128xf32, #tpu.memory_space<vmem>>, vector<1x32x128xf32>
    %39 = vector.shape_cast %38 : vector<1x32x128xf32> to vector<32x128xf32>
    %40 = vector.shape_cast %20 : vector<32x128xf32> to vector<1x32x128xf32>
    tpu.vector_store %arg7[%37, %c0_17, %c0_18], %40 {strides = array<i32>} : memref<2x32x128xf32, #tpu.memory_space<vmem>>, vector<1x32x128xf32>,
    %c1_i32 = arith.constant 1 : i32
    %41 = arith.cmpi eq, %arg1, %c1_i32 : i32
    %42 = arith.extui %41 : i1 to i32
    %c0_i32_19 = arith.constant 0 : i32
    %43 = arith.cmpi ne, %42, %c0_i32_19 : i32
    scf.if %43 {
      %c0_20 = arith.constant 0 : index
      %c0_21 = arith.constant 0 : index
      %44 = vector.load %arg8[%c0_20, %c0_21] : memref<1x1xf32, #tpu.memory_space<vmem>>, vector<1x1xf32>
      %cst_22 = arith.constant 8.000000e+01 : f32
      %45 = vector.broadcast %cst_22 : f32 to vector<1x1xf32>
      %46 = arith.subf %44, %45 : vector<1x1xf32>
      %c0_23 = arith.constant 0 : index
      %c0_24 = arith.constant 0 : index
      %c0_25 = arith.constant 0 : index
      %47 = vector.load %arg7[%c0_23, %c0_24, %c0_25] : memref<2x32x128xf32, #tpu.memory_space<vmem>>, vector<1x32x128xf32>
      %48 = vector.shape_cast %47 : vector<1x32x128xf32> to vector<32x128xf32>
      %49 = vector.broadcast %46 : vector<1x1xf32> to vector<32x128xf32>
      %50 = arith.maximumf %48, %49 : vector<32x128xf32>
      %c1 = arith.constant 1 : index
      %c0_26 = arith.constant 0 : index
      %c0_27 = arith.constant 0 : index
      %51 = vector.load %arg7[%c1, %c0_26, %c0_27] : memref<2x32x128xf32, #tpu.memory_space<vmem>>, vector<1x32x128xf32>
      %52 = vector.shape_cast %51 : vector<1x32x128xf32> to vector<32x128xf32>
      %53 = vector.broadcast %46 : vector<1x1xf32> to vector<32x128xf32>
      %54 = arith.maximumf %52, %53 : vector<32x128xf32>
      %55 = tpu.concatenate %50, %54 in 1 : vector<32x128xf32>, vector<32x128xf32> -> vector<32x256xf32>
      %c0_28 = arith.constant 0 : index
      %c0_29 = arith.constant 0 : index
      %56 = vector.load %arg5[%c0_28, %c0_29] : memref<16x32xf32, #tpu.memory_space<vmem>>, vector<16x32xf32>
      %cst_30 = arith.constant dense<0.000000e+00> : vector<16x256xf32>
      %57 = tpu.matmul %56, %55, %cst_30 {dimension_numbers = #tpu.dot_dimension_numbers<[1], [0], [0], [1], [0, 0, 1, 1], [], []>, precision = #tpu.contract_precision<fp32>} : vector<16x32xf32>, vector<32x256xf32>, vector<16x256xf32> -> vector<16x256xf32>
      %c0_31 = arith.constant 0 : index
      %c0_32 = arith.constant 0 : index
      %c0_33 = arith.constant 0 : index
      %58 = vector.load %arg6[%c0_31, %c0_32, %c0_33] : memref<1x16x256xf32, #tpu.memory_space<vmem>>, vector<1x16x256xf32>
      %59 = vector.shape_cast %58 : vector<1x16x256xf32> to vector<16x256xf32>
      %60 = vector.shape_cast %57 : vector<16x256xf32> to vector<1x16x256xf32>
      tpu.vector_store %arg6[%c0_31, %c0_32, %c0_33], %60 {strides = array<i32>} : memref<1x16x256xf32, #tpu.memory_space<vmem>>, vector<1x16x256xf32>,
    } else {
    }
    return
  }
  func.func @transform_0(%arg0: i32, %arg1: i32) -> (i32, i32, i32) {
    %c0_i32 = arith.constant 0 : i32
    %c0_i32_0 = arith.constant 0 : i32
    return %arg0, %c0_i32, %arg1 : i32, i32, i32
  }
  func.func @transform_1(%arg0: i32, %arg1: i32) -> (i32, i32) {
    %c0_i32 = arith.constant 0 : i32
    %c0_i32_0 = arith.constant 0 : i32
    %c0_i32_1 = arith.constant 0 : i32
    return %c0_i32, %c0_i32_0 : i32, i32
  }
  func.func @transform_2(%arg0: i32, %arg1: i32) -> (i32, i32) {
    %c0_i32 = arith.constant 0 : i32
    %c0_i32_0 = arith.constant 0 : i32
    %c0_i32_1 = arith.constant 0 : i32
    return %c0_i32, %c0_i32_0 : i32, i32
  }
  func.func @transform_3(%arg0: i32, %arg1: i32) -> (i32, i32) {
    %c0_i32 = arith.constant 0 : i32
    %c0_i32_0 = arith.constant 0 : i32
    %c0_i32_1 = arith.constant 0 : i32
    return %c0_i32, %c0_i32_0 : i32, i32
  }
  func.func @transform_4(%arg0: i32, %arg1: i32) -> (i32, i32, i32) {
    %c0_i32 = arith.constant 0 : i32
    %c0_i32_0 = arith.constant 0 : i32
    %c0_i32_1 = arith.constant 0 : i32
    return %arg0, %c0_i32, %c0_i32_0 : i32, i32, i32
  }
}

</mosaic_0001>

<llo_original>
// kernel: mfcc_pallas.1
$region0: #{mfcc_pallas.1}
  #allocation0 [shape = 'u32[]', space=smem, size = 0x4, offset = 0x4, fixed_abs, tag = 'smem constant byte address 0x4 - core index']
  #allocation1 [shape = 'u32[72,128]{1,0:T(1,128)}', space=vmem, size = 0x9000, scoped, tag = 'internal scratch']
  #allocation2 [shape = 'f32[2,32,128]{2,1,0:T(8,128)}', space=vmem, size = 0x8000, scoped, tag = 'scratch operand']
  #allocation3 [shape = 'f32[1,1]{1,0:T(1,128)}', space=vmem, size = 0x200, scoped, tag = 'scratch operand']
  %s0 = inlined_call_operand.vmem [shape: f32[2,128,256], index: 0, kind: input, shape index: {}]
  %s1 = inlined_call_operand.vmem [shape: f32[256,128], index: 1, kind: input, shape index: {}]
  %s2 = inlined_call_operand.vmem [shape: f32[32,128], index: 2, kind: input, shape index: {}]
  %s3 = inlined_call_operand.vmem [shape: f32[16,32], index: 3, kind: input, shape index: {}]
  %s4 = inlined_call_operand.hbm [shape: f32[2,16,256], index: 4, kind: output, shape index: {}]
  %s5 = sld [smem:[#allocation0]]
  $region95: #{mfcc_pallas.1} parent=0
    _
  %s7 = ssub.s32 1, %s5
  %s8 = scalar_select 0, %s7, %s5
  $region1: #{mfcc_pallas.1} parent=0
    #allocation4 [shape = 'u8[131072]{0}', space=vmem, size = 0x20000, scoped, tag = 'input window, operand 0']
    #allocation5 [shape = 'u8[32768]{0}', space=vmem, size = 0x8000, scoped, tag = 'output window, operand 0']
    #allocation6 [shape = 's32[2]{0}', space=sflag, size = 0x8, scoped, tag = 'scoped memory for mfcc_pallas.1']
    %9 = vsyncpa [#allocation6], 0
    %s10 = scalar_lea.sflag [#allocation6], 1
    %11 = vsyncpa %s10, 0
    loop: start=0, step=1, limit=6
    $region2: #{mfcc_pallas.1} parent=1 // loop_pre_header
      _
    $region3: #{mfcc_pallas.1} parent=1 // loop_header
      %s13 = sphi 0, %s17
      %p14 = scmp.ge.s32.totalorder %s13, 6
      %s20 = sphi 0, %s32
      %s21 = sphi 0, %s28
      %s22 = sphi 0, %s20
      %s23 = sphi 0, %s21
      %s24 = sphi 0, %s22
      %s25 = sphi 0, %s23
      %s37 = sphi 0, %s39
      %s40 = sphi 0, %s37
      %s41 = sphi 0, %s40
      %s57 = sphi 0, %s41
      %s61 = sphi 0, %s61
      %s63 = sphi 0, %s61
      %s64 = sphi 0, %s63
      %s78 = sphi 0, %s64
      %s82 = sphi 0, %s82
      %s84 = sphi 0, %s82
      %s85 = sphi 0, %s84
      %s99 = sphi 0, %s85
      %s103 = sphi 0, %s103
      %s105 = sphi 0, %s103
      %s106 = sphi 0, %s105
      %s120 = sphi 0, %s106
      %s126 = sphi 0, %s128
      %s129 = sphi 0, %s126
      %s130 = sphi 0, %s129
      %s146 = sphi 0, %s130
    $region4: #{mfcc_pallas.1} parent=1 // loop_header_branch
      %16 = sbr.rel (%p14) target = $region8
    $region5: #{mfcc_pallas.1} parent=1 // loop_body
      %s18 = ssub.s32 %s13, 1
      %s19 = ssub.s32 %s13, 2
      %s26 = sadd.s32 1, %s21
      %p27 = scmp.ge.s32.totalorder %s26, 2
      %s28 = scalar_select %p27, 0, %s26
      %s29 = sadd.s32 1, %s20
      %s30 = scalar_select %p27, %s29, %s20
      %p31 = scmp.ge.s32.totalorder %s30, 2
      %s32 = scalar_select %p31, 0, %s30
      %s33 = ssub.s32 %s20, %s32
      %s34 = ssub.s32 %s21, %s28
      %s35 = sor.u32 %s33, %s34
      %p36 = scmp.eq.s32.totalorder %s35, 0
      %s38 = sadd.s32 %s37, 1
      %s39 = scalar_select %p36, %s37, %s38
      %p42 = pneg %p36
      %p43 = scmp.eq.s32.totalorder %s13, 3
      %p44 = por %p42, %p43
      %p45 = scmp.ne.s32.totalorder %s37, %s40
      %p46 = scmp.eq.s32.totalorder %s13, 0
      %p47 = por %p45, %p46
      %p48 = scmp.ne.s32.totalorder %s37, %s40
      %p49 = scmp.eq.s32.totalorder %s18, 3
      %p50 = por %p48, %p49
      %p51 = scmp.ne.s32.totalorder %s40, %s41
      %p52 = scmp.eq.s32.totalorder %s18, 0
      %p53 = por %p51, %p52
      %p54 = scmp.ne.s32.totalorder %s40, %s41
      %p55 = scmp.eq.s32.totalorder %s19, 3
      %p56 = por %p54, %p55
      %p58 = scmp.ne.s32.totalorder %s41, %s57
      %p59 = scmp.eq.s32.totalorder %s19, 0
      %p60 = por %p58, %p59
      %s62 = sadd.s32 %s61, 1
      %p65 = scmp.eq.s32.totalorder %s13, 3
      %p66 = scmp.ne.s32.totalorder %s61, %s63
      %p67 = scmp.eq.s32.totalorder %s13, 0
      %p68 = por %p66, %p67
      %p69 = scmp.ne.s32.totalorder %s61, %s63
      %p70 = scmp.eq.s32.totalorder %s18, 3
      %p71 = por %p69, %p70
      %p72 = scmp.ne.s32.totalorder %s63, %s64
      %p73 = scmp.eq.s32.totalorder %s18, 0
      %p74 = por %p72, %p73
      %p75 = scmp.ne.s32.totalorder %s63, %s64
      %p76 = scmp.eq.s32.totalorder %s19, 3
      %p77 = por %p75, %p76
      %p79 = scmp.ne.s32.totalorder %s64, %s78
      %p80 = scmp.eq.s32.totalorder %s19, 0
      %p81 = por %p79, %p80
      %s83 = sadd.s32 %s82, 1
      %p86 = scmp.eq.s32.totalorder %s13, 3
      %p87 = scmp.ne.s32.totalorder %s82, %s84
      %p88 = scmp.eq.s32.totalorder %s13, 0
      %p89 = por %p87, %p88
      %p90 = scmp.ne.s32.totalorder %s82, %s84
      %p91 = scmp.eq.s32.totalorder %s18, 3
      %p92 = por %p90, %p91
      %p93 = scmp.ne.s32.totalorder %s84, %s85
      %p94 = scmp.eq.s32.totalorder %s18, 0
      %p95 = por %p93, %p94
      %p96 = scmp.ne.s32.totalorder %s84, %s85
      %p97 = scmp.eq.s32.totalorder %s19, 3
      %p98 = por %p96, %p97
      %p100 = scmp.ne.s32.totalorder %s85, %s99
      %p101 = scmp.eq.s32.totalorder %s19, 0
      %p102 = por %p100, %p101
      %s104 = sadd.s32 %s103, 1
      %p107 = scmp.eq.s32.totalorder %s13, 3
      %p108 = scmp.ne.s32.totalorder %s103, %s105
      %p109 = scmp.eq.s32.totalorder %s13, 0
      %p110 = por %p108, %p109
      %p111 = scmp.ne.s32.totalorder %s103, %s105
      %p112 = scmp.eq.s32.totalorder %s18, 3
      %p113 = por %p111, %p112
      %p114 = scmp.ne.s32.totalorder %s105, %s106
      %p115 = scmp.eq.s32.totalorder %s18, 0
      %p116 = por %p114, %p115
      %p117 = scmp.ne.s32.totalorder %s105, %s106
      %p118 = scmp.eq.s32.totalorder %s19, 3
      %p119 = por %p117, %p118
      %p121 = scmp.ne.s32.totalorder %s106, %s120
      %p122 = scmp.eq.s32.totalorder %s19, 0
      %p123 = por %p121, %p122
      %s124 = ssub.s32 %s20, %s32
      %p125 = scmp.eq.s32.totalorder %s124, 0
      %s127 = sadd.s32 %s126, 1
      %s128 = scalar_select %p125, %s126, %s127
      %p131 = pneg %p125
      %p132 = scmp.eq.s32.totalorder %s13, 3
      %p133 = por %p131, %p132
      %p134 = scmp.ne.s32.totalorder %s126, %s129
      %p135 = scmp.eq.s32.totalorder %s13, 0
      %p136 = por %p134, %p135
      %p137 = scmp.ne.s32.totalorder %s126, %s129
      %p138 = scmp.eq.s32.totalorder %s18, 3
      %p139 = por %p137, %p138
      %p140 = scmp.ne.s32.totalorder %s129, %s130
      %p141 = scmp.eq.s32.totalorder %s18, 0
      %p142 = por %p140, %p141
      %p143 = scmp.ne.s32.totalorder %s129, %s130
      %p144 = scmp.eq.s32.totalorder %s19, 3
      %p145 = por %p143, %p144
      %p147 = scmp.ne.s32.totalorder %s130, %s146
      %p148 = scmp.eq.s32.totalorder %s19, 0
      %p149 = por %p147, %p148
      %p150 = scmp.le.s32.totalorder 1, %s13
      %p151 = scmp.lt.s32.totalorder %s13, 5
      %p152 = pnand %p150, %p151
      %p153 = pneg %p152
      // Predicated region
      $region9: #{mfcc_pallas.1} parent=5 // pred_check
        _
      $region10: #{mfcc_pallas.1} parent=5 // pred_check_branch
        %155 = sbr.rel (%p152) target = $region12
      $region11: #{mfcc_pallas.1} parent=5 // pred_region
        %s156 = ssub.s32 %s13, 1
        // Predicated region
        $region13: #{mfcc_pallas.1} parent=11 // pred_check
          %p157 = pneg %p74
        $region14: #{mfcc_pallas.1} parent=11 // pred_check_branch
          %159 = sbr.rel (%p157) target = $region16
        $region15: #{mfcc_pallas.1} parent=11 // pred_region
          _
        $region16: #{mfcc_pallas.1} parent=11 // pred_fallthru
          _
        // Predicated region
        $region17: #{mfcc_pallas.1} parent=11 // pred_check
          %p160 = pneg %p95
        $region18: #{mfcc_pallas.1} parent=11 // pred_check_branch
          %162 = sbr.rel (%p160) target = $region20
        $region19: #{mfcc_pallas.1} parent=11 // pred_region
          _
        $region20: #{mfcc_pallas.1} parent=11 // pred_fallthru
          _
        // Predicated region
        $region21: #{mfcc_pallas.1} parent=11 // pred_check
          %p163 = pneg %p116
        $region22: #{mfcc_pallas.1} parent=11 // pred_check_branch
          %165 = sbr.rel (%p163) target = $region24
        $region23: #{mfcc_pallas.1} parent=11 // pred_region
          _
        $region24: #{mfcc_pallas.1} parent=11 // pred_fallthru
          _
      $region12: #{mfcc_pallas.1} parent=5 // pred_fallthru
        _
      %p166 = scmp.lt.s32.totalorder %s13, 4
      // Predicated region
      $region25: #{mfcc_pallas.1} parent=5 // pred_check
        %p167 = pneg %p166
      $region26: #{mfcc_pallas.1} parent=5 // pred_check_branch
        %169 = sbr.rel (%p167) target = $region28
      $region27: #{mfcc_pallas.1} parent=5 // pred_region
        // Predicated region
        $region29: #{mfcc_pallas.1} parent=27 // pred_check
          %p170 = pneg %p47
        $region30: #{mfcc_pallas.1} parent=27 // pred_check_branch
          %172 = sbr.rel (%p170) target = $region32
        $region31: #{mfcc_pallas.1} parent=27 // pred_region
          %s173 = sand.u32 %s37, 1
          %s174 = sand.u32 %s37, 1
          %s175 = smul.addr %s174, 128
          %s176 = scalar_lea.vmem [#allocation4], %s175
          %s177 = smul.addr %s20, 32
          %s178 = sadd.s32 %s21, %s177
          %s179 = smul.addr %s178, 8
          %s180 = scalar_lea.vmem %s0, %s179
          // Predicated region
          $region33: #{mfcc_pallas.1} parent=31 // pred_check
            _
          $region34: #{mfcc_pallas.1} parent=31 // pred_check_branch
            %182 = sbr.rel (0) target = $region36
          $region35: #{mfcc_pallas.1} parent=31 // pred_region
            // Predicated region
            $region37: #{mfcc_pallas.1} parent=35 // pred_check
              _
            $region38: #{mfcc_pallas.1} parent=35 // pred_check_branch
              %184 = sbr.rel (0) target = $region40
            $region39: #{mfcc_pallas.1} parent=35 // pred_region
              // Predicated region
              $region52: #{mfcc_pallas.1} parent=39 // pred_check
                _
              $region53: #{mfcc_pallas.1} parent=39 // pred_check_branch
                %230 = sbr.rel (0) target = $region55
              $region54: #{mfcc_pallas.1} parent=39 // pred_region
                loop: start=0, step=1, limit=1
                $region56: #{mfcc_pallas.1} parent=54 // loop_pre_header
                  _
                $region57: #{mfcc_pallas.1} parent=54 // loop_header
                  %s232 = sphi 0, %s236
                  %p233 = scmp.ge.s32.totalorder %s232, 1
                  %s237 = sphi %s180, %s180
                  %s238 = sphi %s176, %s176
                $region58: #{mfcc_pallas.1} parent=54 // loop_header_branch
                  %235 = sbr.rel (%p233) target = $region62
                $region59: #{mfcc_pallas.1} parent=54 // loop_body
                  %v239 = vld [vmem:[%s237] sm:$0xff]
                  %240 = vst [vmem:[%s238] sm:$0xff] %v239
                  %v241 = vld [vmem:[%s237 + $0x10] sm:$0xff]
                  %242 = vst [vmem:[%s238 + $0x8] sm:$0xff] %v241
                  %v243 = vld [vmem:[%s237 + $0x20] sm:$0xff]
                  %244 = vst [vmem:[%s238 + $0x10] sm:$0xff] %v243
                  %v245 = vld [vmem:[%s237 + $0x30] sm:$0xff]
                  %246 = vst [vmem:[%s238 + $0x18] sm:$0xff] %v245
                  %v247 = vld [vmem:[%s237 + $0x40] sm:$0xff]
                  %248 = vst [vmem:[%s238 + $0x20] sm:$0xff] %v247
                  %v249 = vld [vmem:[%s237 + $0x50] sm:$0xff]
                  %250 = vst [vmem:[%s238 + $0x28] sm:$0xff] %v249
                  %v251 = vld [vmem:[%s237 + $0x60] sm:$0xff]
                  %252 = vst [vmem:[%s238 + $0x30] sm:$0xff] %v251
                  %v253 = vld [vmem:[%s237 + $0x70] sm:$0xff]
                  %254 = vst [vmem:[%s238 + $0x38] sm:$0xff] %v253
                  %v255 = vld [vmem:[%s237 + $0x80] sm:$0xff]
                  %256 = vst [vmem:[%s238 + $0x40] sm:$0xff] %v255
                  %v257 = vld [vmem:[%s237 + $0x90] sm:$0xff]
                  %258 = vst [vmem:[%s238 + $0x48] sm:$0xff] %v257
                  %v259 = vld [vmem:[%s237 + $0xa0] sm:$0xff]
                  %260 = vst [vmem:[%s238 + $0x50] sm:$0xff] %v259
                  %v261 = vld [vmem:[%s237 + $0xb0] sm:$0xff]
                  %262 = vst [vmem:[%s238 + $0x58] sm:$0xff] %v261
                  %v263 = vld [vmem:[%s237 + $0xc0] sm:$0xff]
                  %264 = vst [vmem:[%s238 + $0x60] sm:$0xff] %v263
                  %v265 = vld [vmem:[%s237 + $0xd0] sm:$0xff]
                  %266 = vst [vmem:[%s238 + $0x68] sm:$0xff] %v265
                  %v267 = vld [vmem:[%s237 + $0xe0] sm:$0xff]
                  %268 = vst [vmem:[%s238 + $0x70] sm:$0xff] %v267
                  %v269 = vld [vmem:[%s237 + $0xf0] sm:$0xff]
                  %270 = vst [vmem:[%s238 + $0x78] sm:$0xff] %v269
                $region60: #{mfcc_pallas.1} parent=54 // loop_footer
                  %s236 = sadd.s32 1, %s232
                $region61: #{mfcc_pallas.1} parent=54 // loop_footer_branch
                  %231 = sbr.rel target = $region57
                $region62: #{mfcc_pallas.1} parent=54 // loop_exit
                  _
              $region55: #{mfcc_pallas.1} parent=39 // pred_fallthru
                _
              // Predicated region
              $region63: #{mfcc_pallas.1} parent=39 // pred_check
                _
              $region64: #{mfcc_pallas.1} parent=39 // pred_check_branch
                %272 = sbr.rel target = $region66
              $region65: #{mfcc_pallas.1} parent=39 // pred_region
                _
              $region66: #{mfcc_pallas.1} parent=39 // pred_fallthru
                _
            $region40: #{mfcc_pallas.1} parent=35 // pred_fallthru
              _
            // Predicated region
            $region41: #{mfcc_pallas.1} parent=35 // pred_check
              _
            $region42: #{mfcc_pallas.1} parent=35 // pred_check_branch
              %186 = sbr.rel target = $region44
            $region43: #{mfcc_pallas.1} parent=35 // pred_region
              %s188 = ssub.s32 256, 1
              loop: start=0, step=1, limit=1
              $region45: #{mfcc_pallas.1} parent=43 // loop_pre_header
                _
              $region46: #{mfcc_pallas.1} parent=43 // loop_header
                %s190 = sphi 0, %s194
                %p191 = scmp.ge.s32.totalorder %s190, 1
                %s195 = sphi %s180, %s180
                %s196 = sphi %s176, %s176
              $region47: #{mfcc_pallas.1} parent=43 // loop_header_branch
                %193 = sbr.rel (%p191) target = $region51
              $region48: #{mfcc_pallas.1} parent=43 // loop_body
                %v197 = vld [vmem:[%s195] sm:%s188]
                %198 = vst [vmem:[%s196] sm:%s188] %v197
                %v199 = vld [vmem:[%s195 + $0x10] sm:%s188]
                %200 = vst [vmem:[%s196 + $0x8] sm:%s188] %v199
                %v201 = vld [vmem:[%s195 + $0x20] sm:%s188]
                %202 = vst [vmem:[%s196 + $0x10] sm:%s188] %v201
                %v203 = vld [vmem:[%s195 + $0x30] sm:%s188]
                %204 = vst [vmem:[%s196 + $0x18] sm:%s188] %v203
                %v205 = vld [vmem:[%s195 + $0x40] sm:%s188]
                %206 = vst [vmem:[%s196 + $0x20] sm:%s188] %v205
                %v207 = vld [vmem:[%s195 + $0x50] sm:%s188]
                %208 = vst [vmem:[%s196 + $0x28] sm:%s188] %v207
                %v209 = vld [vmem:[%s195 + $0x60] sm:%s188]
                %210 = vst [vmem:[%s196 + $0x30] sm:%s188] %v209
                %v211 = vld [vmem:[%s195 + $0x70] sm:%s188]
                %212 = vst [vmem:[%s196 + $0x38] sm:%s188] %v211
                %v213 = vld [vmem:[%s195 + $0x80] sm:%s188]
                %214 = vst [vmem:[%s196 + $0x40] sm:%s188] %v213
                %v215 = vld [vmem:[%s195 + $0x90] sm:%s188]
                %216 = vst [vmem:[%s196 + $0x48] sm:%s188] %v215
                %v217 = vld [vmem:[%s195 + $0xa0] sm:%s188]
                %218 = vst [vmem:[%s196 + $0x50] sm:%s188] %v217
                %v219 = vld [vmem:[%s195 + $0xb0] sm:%s188]
                %220 = vst [vmem:[%s196 + $0x58] sm:%s188] %v219
                %v221 = vld [vmem:[%s195 + $0xc0] sm:%s188]
                %222 = vst [vmem:[%s196 + $0x60] sm:%s188] %v221
                %v223 = vld [vmem:[%s195 + $0xd0] sm:%s188]
                %224 = vst [vmem:[%s196 + $0x68] sm:%s188] %v223
                %v225 = vld [vmem:[%s195 + $0xe0] sm:%s188]
                %226 = vst [vmem:[%s196 + $0x70] sm:%s188] %v225
                %v227 = vld [vmem:[%s195 + $0xf0] sm:%s188]
                %228 = vst [vmem:[%s196 + $0x78] sm:%s188] %v227
              $region49: #{mfcc_pallas.1} parent=43 // loop_footer
                %s194 = sadd.s32 1, %s190
              $region50: #{mfcc_pallas.1} parent=43 // loop_footer_branch
                %189 = sbr.rel target = $region46
              $region51: #{mfcc_pallas.1} parent=43 // loop_exit
                _
            $region44: #{mfcc_pallas.1} parent=35 // pred_fallthru
              _
          $region36: #{mfcc_pallas.1} parent=31 // pred_fallthru
            _
          %273 = vnop
        $region32: #{mfcc_pallas.1} parent=27 // pred_fallthru
          _
      $region28: #{mfcc_pallas.1} parent=5 // pred_fallthru
        _
      %p274 = scmp.le.s32.totalorder 1, %s13
      %p275 = scmp.lt.s32.totalorder %s13, 5
      %p276 = pnand %p274, %p275
      %p277 = pneg %p276
      // Predicated region
      $region67: #{mfcc_pallas.1} parent=5 // pred_check
        _
      $region68: #{mfcc_pallas.1} parent=5 // pred_check_branch
        %279 = sbr.rel (%p276) target = $region70
      $region69: #{mfcc_pallas.1} parent=5 // pred_region
        %s280 = ssub.s32 %s13, 1
        %s281 = sand.u32 %s40, 1
        %s282 = sand.u32 %s40, 1
        %s283 = smul.addr %s282, 128
        %s284 = scalar_lea.vmem [#allocation4], %s283
        // Predicated region
        $region71: #{mfcc_pallas.1} parent=69 // pred_check
          %p285 = pneg %p53
        $region72: #{mfcc_pallas.1} parent=69 // pred_check_branch
          %287 = sbr.rel (%p285) target = $region74
        $region73: #{mfcc_pallas.1} parent=69 // pred_region
          _
        $region74: #{mfcc_pallas.1} parent=69 // pred_fallthru
          _
        %s288 = sand.u32 %s40, 1
        %s289 = sand.u32 %s40, 1
        %s290 = smul.addr %s289, 128
        %s291 = scalar_lea.vmem [#allocation4], %s290
        %p292 = pneg %p53
        %p293 = pneg %p50
        %p294 = pneg %p74
        %p295 = pneg %p71
        %p296 = pneg %p95
        %p297 = pneg %p92
        %p298 = pneg %p116
        %p299 = pneg %p113
        %p300 = pneg %p142
        %p301 = pneg %p139
        %s302 = sand.u32 %s129, 1
        %s303 = scalar_lea.sflag [#allocation6], %s302
        %s304 = sand.u32 %s129, 1
        %s305 = smul.addr %s304, 32
        %s306 = scalar_lea.vmem [#allocation5], %s305
        %p307 = scmp.eq.s32.totalorder %s23, 0
        // Predicated region
        $region75: #{mfcc_pallas.1} parent=69 // pred_check
          %p308 = pneg %p307
        $region76: #{mfcc_pallas.1} parent=69 // pred_check_branch
          %310 = sbr.rel (%p308) target = $region78
        $region77: #{mfcc_pallas.1} parent=69 // pred_region
          %vm311 = vcmask 0
          %312 = vst.msk [vmem:[#allocation3] sm:$0x1] %vm311, -inf
        $region78: #{mfcc_pallas.1} parent=69 // pred_fallthru
          _
        %v313 = vld [vmem:[%s284] sm:$0xff]
        %v314 = vld [vmem:[%s284 + $0x8] sm:$0xff]
        %v315 = vld [vmem:[%s284 + $0x10] sm:$0xff]
        %v316 = vld [vmem:[%s284 + $0x18] sm:$0xff]
        %v317 = vld [vmem:[%s284 + $0x20] sm:$0xff]
        %v318 = vld [vmem:[%s284 + $0x28] sm:$0xff]
        %v319 = vld [vmem:[%s284 + $0x30] sm:$0xff]
        %v320 = vld [vmem:[%s284 + $0x38] sm:$0xff]
        %v321 = vld [vmem:[%s284 + $0x40] sm:$0xff]
        %v322 = vld [vmem:[%s284 + $0x48] sm:$0xff]
        %v323 = vld [vmem:[%s284 + $0x50] sm:$0xff]
        %v324 = vld [vmem:[%s284 + $0x58] sm:$0xff]
        %v325 = vld [vmem:[%s284 + $0x60] sm:$0xff]
        %v326 = vld [vmem:[%s284 + $0x68] sm:$0xff]
        %v327 = vld [vmem:[%s284 + $0x70] sm:$0xff]
        %v328 = vld [vmem:[%s284 + $0x78] sm:$0xff]
        %v329 = vld [vmem:[%s1] sm:$0xff]
        %v330 = vld [vmem:[%s1 + $0x8] sm:$0xff]
        %v331 = vld [vmem:[%s1 + $0x10] sm:$0xff]
        %v332 = vld [vmem:[%s1 + $0x18] sm:$0xff]
        %v333 = vld [vmem:[%s1 + $0x20] sm:$0xff]
        %v334 = vld [vmem:[%s1 + $0x28] sm:$0xff]
        %v335 = vld [vmem:[%s1 + $0x30] sm:$0xff]
        %v336 = vld [vmem:[%s1 + $0x38] sm:$0xff]
        %v337 = vld [vmem:[%s1 + $0x40] sm:$0xff]
        %v338 = vld [vmem:[%s1 + $0x48] sm:$0xff]
        %v339 = vld [vmem:[%s1 + $0x50] sm:$0xff]
        %v340 = vld [vmem:[%s1 + $0x58] sm:$0xff]
        %v341 = vld [vmem:[%s1 + $0x60] sm:$0xff]
        %v342 = vld [vmem:[%s1 + $0x68] sm:$0xff]
        %v343 = vld [vmem:[%s1 + $0x70] sm:$0xff]
        %v344 = vld [vmem:[%s1 + $0x78] sm:$0xff]
        %v345 = vld [vmem:[%s1 + $0x80] sm:$0xff]
        %v346 = vld [vmem:[%s1 + $0x88] sm:$0xff]
        %v347 = vld [vmem:[%s1 + $0x90] sm:$0xff]
        %v348 = vld [vmem:[%s1 + $0x98] sm:$0xff]
        %v349 = vld [vmem:[%s1 + $0xa0] sm:$0xff]
        %v350 = vld [vmem:[%s1 + $0xa8] sm:$0xff]
        %v351 = vld [vmem:[%s1 + $0xb0] sm:$0xff]
        %v352 = vld [vmem:[%s1 + $0xb8] sm:$0xff]
        %v353 = vld [vmem:[%s1 + $0xc0] sm:$0xff]
        %v354 = vld [vmem:[%s1 + $0xc8] sm:$0xff]
        %v355 = vld [vmem:[%s1 + $0xd0] sm:$0xff]
        %v356 = vld [vmem:[%s1 + $0xd8] sm:$0xff]
        %v357 = vld [vmem:[%s1 + $0xe0] sm:$0xff]
        %v358 = vld [vmem:[%s1 + $0xe8] sm:$0xff]
        %v359 = vld [vmem:[%s1 + $0xf0] sm:$0xff]
        %v360 = vld [vmem:[%s1 + $0xf8] sm:$0xff]
        %v361 = vand.u32 %v328, 4294901760
        %362 = vmatpush.msra.mxu0 %v361
        %v363 = vand.u32 %v327, 4294901760
        %364 = vmatpush.msra.mxu0 %v363
        %v365 = vand.u32 %v326, 4294901760
        %366 = vmatpush.msra.mxu0 %v365
        %v367 = vand.u32 %v325, 4294901760
        %368 = vmatpush.msra.mxu0 %v367
        %v369 = vand.u32 %v324, 4294901760
        %370 = vmatpush.msra.mxu0 %v369
        %v371 = vand.u32 %v323, 4294901760
        %372 = vmatpush.msra.mxu0 %v371
        %v373 = vand.u32 %v322, 4294901760
        %374 = vmatpush.msra.mxu0 %v373
        %v375 = vand.u32 %v321, 4294901760
        %376 = vmatpush.msra.mxu0 %v375
        %v377 = vand.u32 %v320, 4294901760
        %378 = vmatpush.msra.mxu0 %v377
        %v379 = vand.u32 %v319, 4294901760
        %380 = vmatpush.msra.mxu0 %v379
        %v381 = vand.u32 %v318, 4294901760
        %382 = vmatpush.msra.mxu0 %v381
        %v383 = vand.u32 %v317, 4294901760
        %384 = vmatpush.msra.mxu0 %v383
        %v385 = vand.u32 %v316, 4294901760
        %386 = vmatpush.msra.mxu0 %v385
        %v387 = vand.u32 %v315, 4294901760
        %388 = vmatpush.msra.mxu0 %v387
        %v389 = vand.u32 %v314, 4294901760
        %390 = vmatpush.msra.mxu0 %v389
        %v391 = vand.u32 %v313, 4294901760
        %392 = vmatpush.msra.mxu0 %v391
        %v393 = vand.u32 %v329, 4294901760
        %v394 = vsub.f32 %v329, %v393
        %v395 = vand.u32 %v394, 4294901760
        %v396 = vsub.f32 %v394, %v395
        %v397 = vand.u32 %v396, 4294901760
        %398 = vmatmul.f32.gmra.mxu0 %v397
        %v399 = vpop.f32.mrf.mxu0
        %v400 = vadd.f32 0.0, %v399
        %v401 = vand.u32 %v330, 4294901760
        %v402 = vsub.f32 %v330, %v401
        %v403 = vand.u32 %v402, 4294901760
        %v404 = vsub.f32 %v402, %v403
        %v405 = vand.u32 %v404, 4294901760
        %406 = vmatmul.f32.gmra.mxu0 %v405
        %v407 = vpop.f32.mrf.mxu0
        %v408 = vadd.f32 0.0, %v407
        %v409 = vand.u32 %v331, 4294901760
        %v410 = vsub.f32 %v331, %v409
        %v411 = vand.u32 %v410, 4294901760
        %v412 = vsub.f32 %v410, %v411
        %v413 = vand.u32 %v412, 4294901760
        %414 = vmatmul.f32.gmra.mxu0 %v413
        %v415 = vpop.f32.mrf.mxu0
        %v416 = vadd.f32 0.0, %v415
        %v417 = vand.u32 %v332, 4294901760
        %v418 = vsub.f32 %v332, %v417
        %v419 = vand.u32 %v418, 4294901760
        %v420 = vsub.f32 %v418, %v419
        %v421 = vand.u32 %v420, 4294901760
        %422 = vmatmul.f32.gmra.mxu0 %v421
        %v423 = vpop.f32.mrf.mxu0
        %v424 = vadd.f32 0.0, %v423
        %v425 = vand.u32 %v333, 4294901760
        %v426 = vsub.f32 %v333, %v425
        %v427 = vand.u32 %v426, 4294901760
        %v428 = vsub.f32 %v426, %v427
        %v429 = vand.u32 %v428, 4294901760
        %430 = vmatmul.f32.gmra.mxu0 %v429
        %v431 = vpop.f32.mrf.mxu0
        %v432 = vadd.f32 0.0, %v431
        %v433 = vand.u32 %v334, 4294901760
        %v434 = vsub.f32 %v334, %v433
        %v435 = vand.u32 %v434, 4294901760
        %v436 = vsub.f32 %v434, %v435
        %v437 = vand.u32 %v436, 4294901760
        %438 = vmatmul.f32.gmra.mxu0 %v437
        %v439 = vpop.f32.mrf.mxu0
        %v440 = vadd.f32 0.0, %v439
        %v441 = vand.u32 %v335, 4294901760
        %v442 = vsub.f32 %v335, %v441
        %v443 = vand.u32 %v442, 4294901760
        %v444 = vsub.f32 %v442, %v443
        %v445 = vand.u32 %v444, 4294901760
        %446 = vmatmul.f32.gmra.mxu0 %v445
        %v447 = vpop.f32.mrf.mxu0
        %v448 = vadd.f32 0.0, %v447
        %v449 = vand.u32 %v336, 4294901760
        %v450 = vsub.f32 %v336, %v449
        %v451 = vand.u32 %v450, 4294901760
        %v452 = vsub.f32 %v450, %v451
        %v453 = vand.u32 %v452, 4294901760
        %454 = vmatmul.f32.gmra.mxu0 %v453
        %v455 = vpop.f32.mrf.mxu0
        %v456 = vadd.f32 0.0, %v455
        %v457 = vand.u32 %v337, 4294901760
        %v458 = vsub.f32 %v337, %v457
        %v459 = vand.u32 %v458, 4294901760
        %v460 = vsub.f32 %v458, %v459
        %v461 = vand.u32 %v460, 4294901760
        %462 = vmatmul.f32.gmra.mxu0 %v461
        %v463 = vpop.f32.mrf.mxu0
        %v464 = vadd.f32 0.0, %v463
        %v465 = vand.u32 %v338, 4294901760
        %v466 = vsub.f32 %v338, %v465
        %v467 = vand.u32 %v466, 4294901760
        %v468 = vsub.f32 %v466, %v467
        %v469 = vand.u32 %v468, 4294901760
        %470 = vmatmul.f32.gmra.mxu0 %v469
        %v471 = vpop.f32.mrf.mxu0
        %v472 = vadd.f32 0.0, %v471
        %v473 = vand.u32 %v339, 4294901760
        %v474 = vsub.f32 %v339, %v473
        %v475 = vand.u32 %v474, 4294901760
        %v476 = vsub.f32 %v474, %v475
        %v477 = vand.u32 %v476, 4294901760
        %478 = vmatmul.f32.gmra.mxu0 %v477
        %v479 = vpop.f32.mrf.mxu0
        %v480 = vadd.f32 0.0, %v479
        %v481 = vand.u32 %v340, 4294901760
        %v482 = vsub.f32 %v340, %v481
        %v483 = vand.u32 %v482, 4294901760
        %v484 = vsub.f32 %v482, %v483
        %v485 = vand.u32 %v484, 4294901760
        %486 = vmatmul.f32.gmra.mxu0 %v485
        %v487 = vpop.f32.mrf.mxu0
        %v488 = vadd.f32 0.0, %v487
        %v489 = vand.u32 %v341, 4294901760
        %v490 = vsub.f32 %v341, %v489
        %v491 = vand.u32 %v490, 4294901760
        %v492 = vsub.f32 %v490, %v491
        %v493 = vand.u32 %v492, 4294901760
        %494 = vmatmul.f32.gmra.mxu0 %v493
        %v495 = vpop.f32.mrf.mxu0
        %v496 = vadd.f32 0.0, %v495
        %v497 = vand.u32 %v342, 4294901760
        %v498 = vsub.f32 %v342, %v497
        %v499 = vand.u32 %v498, 4294901760
        %v500 = vsub.f32 %v498, %v499
        %v501 = vand.u32 %v500, 4294901760
        %502 = vmatmul.f32.gmra.mxu0 %v501
        %v503 = vpop.f32.mrf.mxu0
        %v504 = vadd.f32 0.0, %v503
        %v505 = vand.u32 %v343, 4294901760
        %v506 = vsub.f32 %v343, %v505
        %v507 = vand.u32 %v506, 4294901760
        %v508 = vsub.f32 %v506, %v507
        %v509 = vand.u32 %v508, 4294901760
        %510 = vmatmul.f32.gmra.mxu0 %v509
        %v511 = vpop.f32.mrf.mxu0
        %v512 = vadd.f32 0.0, %v511
        %v513 = vand.u32 %v344, 4294901760
        %v514 = vsub.f32 %v344, %v513
        %v515 = vand.u32 %v514, 4294901760
        %v516 = vsub.f32 %v514, %v515
        %v517 = vand.u32 %v516, 4294901760
        %518 = vmatmul.f32.gmra.mxu0 %v517
        %v519 = vpop.f32.mrf.mxu0
        %v520 = vadd.f32 0.0, %v519
        %v521 = vand.u32 %v345, 4294901760
        %v522 = vsub.f32 %v345, %v521
        %v523 = vand.u32 %v522, 4294901760
        %v524 = vsub.f32 %v522, %v523
        %v525 = vand.u32 %v524, 4294901760
        %526 = vmatmul.f32.gmra.mxu0 %v525
        %v527 = vpop.f32.mrf.mxu0
        %v528 = vadd.f32 0.0, %v527
        %v529 = vand.u32 %v346, 4294901760
        %v530 = vsub.f32 %v346, %v529
        %v531 = vand.u32 %v530, 4294901760
        %v532 = vsub.f32 %v530, %v531
        %v533 = vand.u32 %v532, 4294901760
        %534 = vmatmul.f32.gmra.mxu0 %v533
        %v535 = vpop.f32.mrf.mxu0
        %v536 = vadd.f32 0.0, %v535
        %v537 = vand.u32 %v347, 4294901760
        %v538 = vsub.f32 %v347, %v537
        %v539 = vand.u32 %v538, 4294901760
        %v540 = vsub.f32 %v538, %v539
        %v541 = vand.u32 %v540, 4294901760
        %542 = vmatmul.f32.gmra.mxu0 %v541
        %v543 = vpop.f32.mrf.mxu0
        %v544 = vadd.f32 0.0, %v543
        %v545 = vand.u32 %v348, 4294901760
        %v546 = vsub.f32 %v348, %v545
        %v547 = vand.u32 %v546, 4294901760
        %v548 = vsub.f32 %v546, %v547
        %v549 = vand.u32 %v548, 4294901760
        %550 = vmatmul.f32.gmra.mxu0 %v549
        %v551 = vpop.f32.mrf.mxu0
        %v552 = vadd.f32 0.0, %v551
        %v553 = vand.u32 %v349, 4294901760
        %v554 = vsub.f32 %v349, %v553
        %v555 = vand.u32 %v554, 4294901760
        %v556 = vsub.f32 %v554, %v555
        %v557 = vand.u32 %v556, 4294901760
        %558 = vmatmul.f32.gmra.mxu0 %v557
        %v559 = vpop.f32.mrf.mxu0
        %v560 = vadd.f32 0.0, %v559
        %v561 = vand.u32 %v350, 4294901760
        %v562 = vsub.f32 %v350, %v561
        %v563 = vand.u32 %v562, 4294901760
        %v564 = vsub.f32 %v562, %v563
        %v565 = vand.u32 %v564, 4294901760
        %566 = vmatmul.f32.gmra.mxu0 %v565
        %v567 = vpop.f32.mrf.mxu0
        %v568 = vadd.f32 0.0, %v567
        %v569 = vand.u32 %v351, 4294901760
        %v570 = vsub.f32 %v351, %v569
        %v571 = vand.u32 %v570, 4294901760
        %v572 = vsub.f32 %v570, %v571
        %v573 = vand.u32 %v572, 4294901760
        %574 = vmatmul.f32.gmra.mxu0 %v573
        %v575 = vpop.f32.mrf.mxu0
        %v576 = vadd.f32 0.0, %v575
        %v577 = vand.u32 %v352, 4294901760
        %v578 = vsub.f32 %v352, %v577
        %v579 = vand.u32 %v578, 4294901760
        %v580 = vsub.f32 %v578, %v579
        %v581 = vand.u32 %v580, 4294901760
        %582 = vmatmul.f32.gmra.mxu0 %v581
        %v583 = vpop.f32.mrf.mxu0
        %v584 = vadd.f32 0.0, %v583
        %v585 = vand.u32 %v353, 4294901760
        %v586 = vsub.f32 %v353, %v585
        %v587 = vand.u32 %v586, 4294901760
        %v588 = vsub.f32 %v586, %v587
        %v589 = vand.u32 %v588, 4294901760
        %590 = vmatmul.f32.gmra.mxu0 %v589
        %v591 = vpop.f32.mrf.mxu0
        %v592 = vadd.f32 0.0, %v591
        %v593 = vand.u32 %v354, 4294901760
        %v594 = vsub.f32 %v354, %v593
        %v595 = vand.u32 %v594, 4294901760
        %v596 = vsub.f32 %v594, %v595
        %v597 = vand.u32 %v596, 4294901760
        %598 = vmatmul.f32.gmra.mxu0 %v597
        %v599 = vpop.f32.mrf.mxu0
        %v600 = vadd.f32 0.0, %v599
        %v601 = vand.u32 %v355, 4294901760
        %v602 = vsub.f32 %v355, %v601
        %v603 = vand.u32 %v602, 4294901760
        %v604 = vsub.f32 %v602, %v603
        %v605 = vand.u32 %v604, 4294901760
        %606 = vmatmul.f32.gmra.mxu0 %v605
        %v607 = vpop.f32.mrf.mxu0
        %v608 = vadd.f32 0.0, %v607
        %v609 = vand.u32 %v356, 4294901760
        %v610 = vsub.f32 %v356, %v609
        %v611 = vand.u32 %v610, 4294901760
        %v612 = vsub.f32 %v610, %v611
        %v613 = vand.u32 %v612, 4294901760
        %614 = vmatmul.f32.gmra.mxu0 %v613
        %v615 = vpop.f32.mrf.mxu0
        %v616 = vadd.f32 0.0, %v615
        %v617 = vand.u32 %v357, 4294901760
        %v618 = vsub.f32 %v357, %v617
        %v619 = vand.u32 %v618, 4294901760
        %v620 = vsub.f32 %v618, %v619
        %v621 = vand.u32 %v620, 4294901760
        %622 = vmatmul.f32.gmra.mxu0 %v621
        %v623 = vpop.f32.mrf.mxu0
        %v624 = vadd.f32 0.0, %v623
        %v625 = vand.u32 %v358, 4294901760
        %v626 = vsub.f32 %v358, %v625
        %v627 = vand.u32 %v626, 4294901760
        %v628 = vsub.f32 %v626, %v627
        %v629 = vand.u32 %v628, 4294901760
        %630 = vmatmul.f32.gmra.mxu0 %v629
        %v631 = vpop.f32.mrf.mxu0
        %v632 = vadd.f32 0.0, %v631
        %v633 = vand.u32 %v359, 4294901760
        %v634 = vsub.f32 %v359, %v633
        %v635 = vand.u32 %v634, 4294901760
        %v636 = vsub.f32 %v634, %v635
        %v637 = vand.u32 %v636, 4294901760
        %638 = vmatmul.f32.gmra.mxu0 %v637
        %v639 = vpop.f32.mrf.mxu0
        %v640 = vadd.f32 0.0, %v639
        %v641 = vand.u32 %v360, 4294901760
        %v642 = vsub.f32 %v360, %v641
        %v643 = vand.u32 %v642, 4294901760
        %v644 = vsub.f32 %v642, %v643
        %v645 = vand.u32 %v644, 4294901760
        %646 = vmatmul.f32.gmra.mxu0 %v645
        %v647 = vpop.f32.mrf.mxu0
        %v648 = vadd.f32 0.0, %v647
        %649 = vdwg.mxu0
        %v650 = vand.u32 %v328, 4294901760
        %v651 = vsub.f32 %v328, %v650
        %v652 = vand.u32 %v651, 4294901760
        %v653 = vsub.f32 %v651, %v652
        %v654 = vand.u32 %v653, 4294901760
        %655 = vmatpush.msra.mxu0 %v654
        %v656 = vand.u32 %v327, 4294901760
        %v657 = vsub.f32 %v327, %v656
        %v658 = vand.u32 %v657, 4294901760
        %v659 = vsub.f32 %v657, %v658
        %v660 = vand.u32 %v659, 4294901760
        %661 = vmatpush.msra.mxu0 %v660
        %v662 = vand.u32 %v326, 4294901760
        %v663 = vsub.f32 %v326, %v662
        %v664 = vand.u32 %v663, 4294901760
        %v665 = vsub.f32 %v663, %v664
        %v666 = vand.u32 %v665, 4294901760
        %667 = vmatpush.msra.mxu0 %v666
        %v668 = vand.u32 %v325, 4294901760
        %v669 = vsub.f32 %v325, %v668
        %v670 = vand.u32 %v669, 4294901760
        %v671 = vsub.f32 %v669, %v670
        %v672 = vand.u32 %v671, 4294901760
        %673 = vmatpush.msra.mxu0 %v672
        %v674 = vand.u32 %v324, 4294901760
        %v675 = vsub.f32 %v324, %v674
        %v676 = vand.u32 %v675, 4294901760
        %v677 = vsub.f32 %v675, %v676
        %v678 = vand.u32 %v677, 4294901760
        %679 = vmatpush.msra.mxu0 %v678
        %v680 = vand.u32 %v323, 4294901760
        %v681 = vsub.f32 %v323, %v680
        %v682 = vand.u32 %v681, 4294901760
        %v683 = vsub.f32 %v681, %v682
        %v684 = vand.u32 %v683, 4294901760
        %685 = vmatpush.msra.mxu0 %v684
        %v686 = vand.u32 %v322, 4294901760
        %v687 = vsub.f32 %v322, %v686
        %v688 = vand.u32 %v687, 4294901760
        %v689 = vsub.f32 %v687, %v688
        %v690 = vand.u32 %v689, 4294901760
        %691 = vmatpush.msra.mxu0 %v690
        %v692 = vand.u32 %v321, 4294901760
        %v693 = vsub.f32 %v321, %v692
        %v694 = vand.u32 %v693, 4294901760
        %v695 = vsub.f32 %v693, %v694
        %v696 = vand.u32 %v695, 4294901760
        %697 = vmatpush.msra.mxu0 %v696
        %v698 = vand.u32 %v320, 4294901760
        %v699 = vsub.f32 %v320, %v698
        %v700 = vand.u32 %v699, 4294901760
        %v701 = vsub.f32 %v699, %v700
        %v702 = vand.u32 %v701, 4294901760
        %703 = vmatpush.msra.mxu0 %v702
        %v704 = vand.u32 %v319, 4294901760
        %v705 = vsub.f32 %v319, %v704
        %v706 = vand.u32 %v705, 4294901760
        %v707 = vsub.f32 %v705, %v706
        %v708 = vand.u32 %v707, 4294901760
        %709 = vmatpush.msra.mxu0 %v708
        %v710 = vand.u32 %v318, 4294901760
        %v711 = vsub.f32 %v318, %v710
        %v712 = vand.u32 %v711, 4294901760
        %v713 = vsub.f32 %v711, %v712
        %v714 = vand.u32 %v713, 4294901760
        %715 = vmatpush.msra.mxu0 %v714
        %v716 = vand.u32 %v317, 4294901760
        %v717 = vsub.f32 %v317, %v716
        %v718 = vand.u32 %v717, 4294901760
        %v719 = vsub.f32 %v717, %v718
        %v720 = vand.u32 %v719, 4294901760
        %721 = vmatpush.msra.mxu0 %v720
        %v722 = vand.u32 %v316, 4294901760
        %v723 = vsub.f32 %v316, %v722
        %v724 = vand.u32 %v723, 4294901760
        %v725 = vsub.f32 %v723, %v724
        %v726 = vand.u32 %v725, 4294901760
        %727 = vmatpush.msra.mxu0 %v726
        %v728 = vand.u32 %v315, 4294901760
        %v729 = vsub.f32 %v315, %v728
        %v730 = vand.u32 %v729, 4294901760
        %v731 = vsub.f32 %v729, %v730
        %v732 = vand.u32 %v731, 4294901760
        %733 = vmatpush.msra.mxu0 %v732
        %v734 = vand.u32 %v314, 4294901760
        %v735 = vsub.f32 %v314, %v734
        %v736 = vand.u32 %v735, 4294901760
        %v737 = vsub.f32 %v735, %v736
        %v738 = vand.u32 %v737, 4294901760
        %739 = vmatpush.msra.mxu0 %v738
        %v740 = vand.u32 %v313, 4294901760
        %v741 = vsub.f32 %v313, %v740
        %v742 = vand.u32 %v741, 4294901760
        %v743 = vsub.f32 %v741, %v742
        %v744 = vand.u32 %v743, 4294901760
        %745 = vmatpush.msra.mxu0 %v744
        %v746 = vand.u32 %v329, 4294901760
        %747 = vmatmul.f32.gmra.mxu0 %v746
        %v748 = vpop.f32.mrf.mxu0
        %v749 = vadd.f32 %v400, %v748
        %v750 = vand.u32 %v330, 4294901760
        %751 = vmatmul.f32.gmra.mxu0 %v750
        %v752 = vpop.f32.mrf.mxu0
        %v753 = vadd.f32 %v408, %v752
        %v754 = vand.u32 %v331, 4294901760
        %755 = vmatmul.f32.gmra.mxu0 %v754
        %v756 = vpop.f32.mrf.mxu0
        %v757 = vadd.f32 %v416, %v756
        %v758 = vand.u32 %v332, 4294901760
        %759 = vmatmul.f32.gmra.mxu0 %v758
        %v760 = vpop.f32.mrf.mxu0
        %v761 = vadd.f32 %v424, %v760
        %v762 = vand.u32 %v333, 4294901760
        %763 = vmatmul.f32.gmra.mxu0 %v762
        %v764 = vpop.f32.mrf.mxu0
        %v765 = vadd.f32 %v432, %v764
        %v766 = vand.u32 %v334, 4294901760
        %767 = vmatmul.f32.gmra.mxu0 %v766
        %v768 = vpop.f32.mrf.mxu0
        %v769 = vadd.f32 %v440, %v768
        %v770 = vand.u32 %v335, 4294901760
        %771 = vmatmul.f32.gmra.mxu0 %v770
        %v772 = vpop.f32.mrf.mxu0
        %v773 = vadd.f32 %v448, %v772
        %v774 = vand.u32 %v336, 4294901760
        %775 = vmatmul.f32.gmra.mxu0 %v774
        %v776 = vpop.f32.mrf.mxu0
        %v777 = vadd.f32 %v456, %v776
        %v778 = vand.u32 %v337, 4294901760
        %779 = vmatmul.f32.gmra.mxu0 %v778
        %v780 = vpop.f32.mrf.mxu0
        %v781 = vadd.f32 %v464, %v780
        %v782 = vand.u32 %v338, 4294901760
        %783 = vmatmul.f32.gmra.mxu0 %v782
        %v784 = vpop.f32.mrf.mxu0
        %v785 = vadd.f32 %v472, %v784
        %v786 = vand.u32 %v339, 4294901760
        %787 = vmatmul.f32.gmra.mxu0 %v786
        %v788 = vpop.f32.mrf.mxu0
        %v789 = vadd.f32 %v480, %v788
        %v790 = vand.u32 %v340, 4294901760
        %791 = vmatmul.f32.gmra.mxu0 %v790
        %v792 = vpop.f32.mrf.mxu0
        %v793 = vadd.f32 %v488, %v792
        %v794 = vand.u32 %v341, 4294901760
        %795 = vmatmul.f32.gmra.mxu0 %v794
        %v796 = vpop.f32.mrf.mxu0
        %v797 = vadd.f32 %v496, %v796
        %v798 = vand.u32 %v342, 4294901760
        %799 = vmatmul.f32.gmra.mxu0 %v798
        %v800 = vpop.f32.mrf.mxu0
        %v801 = vadd.f32 %v504, %v800
        %v802 = vand.u32 %v343, 4294901760
        %803 = vmatmul.f32.gmra.mxu0 %v802
        %v804 = vpop.f32.mrf.mxu0
        %v805 = vadd.f32 %v512, %v804
        %v806 = vand.u32 %v344, 4294901760
        %807 = vmatmul.f32.gmra.mxu0 %v806
        %v808 = vpop.f32.mrf.mxu0
        %v809 = vadd.f32 %v520, %v808
        %v810 = vand.u32 %v345, 4294901760
        %811 = vmatmul.f32.gmra.mxu0 %v810
        %v812 = vpop.f32.mrf.mxu0
        %v813 = vadd.f32 %v528, %v812
        %v814 = vand.u32 %v346, 4294901760
        %815 = vmatmul.f32.gmra.mxu0 %v814
        %v816 = vpop.f32.mrf.mxu0
        %v817 = vadd.f32 %v536, %v816
        %v818 = vand.u32 %v347, 4294901760
        %819 = vmatmul.f32.gmra.mxu0 %v818
        %v820 = vpop.f32.mrf.mxu0
        %v821 = vadd.f32 %v544, %v820
        %v822 = vand.u32 %v348, 4294901760
        %823 = vmatmul.f32.gmra.mxu0 %v822
        %v824 = vpop.f32.mrf.mxu0
        %v825 = vadd.f32 %v552, %v824
        %v826 = vand.u32 %v349, 4294901760
        %827 = vmatmul.f32.gmra.mxu0 %v826
        %v828 = vpop.f32.mrf.mxu0
        %v829 = vadd.f32 %v560, %v828
        %v830 = vand.u32 %v350, 4294901760
        %831 = vmatmul.f32.gmra.mxu0 %v830
        %v832 = vpop.f32.mrf.mxu0
        %v833 = vadd.f32 %v568, %v832
        %v834 = vand.u32 %v351, 4294901760
        %835 = vmatmul.f32.gmra.mxu0 %v834
        %v836 = vpop.f32.mrf.mxu0
        %v837 = vadd.f32 %v576, %v836
        %v838 = vand.u32 %v352, 4294901760
        %839 = vmatmul.f32.gmra.mxu0 %v838
        %v840 = vpop.f32.mrf.mxu0
        %v841 = vadd.f32 %v584, %v840
        %v842 = vand.u32 %v353, 4294901760
        %843 = vmatmul.f32.gmra.mxu0 %v842
        %v844 = vpop.f32.mrf.mxu0
        %v845 = vadd.f32 %v592, %v844
        %v846 = vand.u32 %v354, 4294901760
        %847 = vmatmul.f32.gmra.mxu0 %v846
        %v848 = vpop.f32.mrf.mxu0
        %v849 = vadd.f32 %v600, %v848
        %v850 = vand.u32 %v355, 4294901760
        %851 = vmatmul.f32.gmra.mxu0 %v850
        %v852 = vpop.f32.mrf.mxu0
        %v853 = vadd.f32 %v608, %v852
        %v854 = vand.u32 %v356, 4294901760
        %855 = vmatmul.f32.gmra.mxu0 %v854
        %v856 = vpop.f32.mrf.mxu0
        %v857 = vadd.f32 %v616, %v856
        %v858 = vand.u32 %v357, 4294901760
        %859 = vmatmul.f32.gmra.mxu0 %v858
        %v860 = vpop.f32.mrf.mxu0
        %v861 = vadd.f32 %v624, %v860
        %v862 = vand.u32 %v358, 4294901760
        %863 = vmatmul.f32.gmra.mxu0 %v862
        %v864 = vpop.f32.mrf.mxu0
        %v865 = vadd.f32 %v632, %v864
        %v866 = vand.u32 %v359, 4294901760
        %867 = vmatmul.f32.gmra.mxu0 %v866
        %v868 = vpop.f32.mrf.mxu0
        %v869 = vadd.f32 %v640, %v868
        %v870 = vand.u32 %v360, 4294901760
        %871 = vmatmul.f32.gmra.mxu0 %v870
        %v872 = vpop.f32.mrf.mxu0
        %v873 = vadd.f32 %v648, %v872
        %874 = vdwg.mxu0
        %v875 = vand.u32 %v328, 4294901760
        %v876 = vsub.f32 %v328, %v875
        %877 = vmatpush.msra.mxu0 %v876
        %v878 = vand.u32 %v327, 4294901760
        %v879 = vsub.f32 %v327, %v878
        %880 = vmatpush.msra.mxu0 %v879
        %v881 = vand.u32 %v326, 4294901760
        %v882 = vsub.f32 %v326, %v881
        %883 = vmatpush.msra.mxu0 %v882
        %v884 = vand.u32 %v325, 4294901760
        %v885 = vsub.f32 %v325, %v884
        %886 = vmatpush.msra.mxu0 %v885
        %v887 = vand.u32 %v324, 4294901760
        %v888 = vsub.f32 %v324, %v887
        %889 = vmatpush.msra.mxu0 %v888
        %v890 = vand.u32 %v323, 4294901760
        %v891 = vsub.f32 %v323, %v890
        %892 = vmatpush.msra.mxu0 %v891
        %v893 = vand.u32 %v322, 4294901760
        %v894 = vsub.f32 %v322, %v893
        %895 = vmatpush.msra.mxu0 %v894
        %v896 = vand.u32 %v321, 4294901760
        %v897 = vsub.f32 %v321, %v896
        %898 = vmatpush.msra.mxu0 %v897
        %v899 = vand.u32 %v320, 4294901760
        %v900 = vsub.f32 %v320, %v899
        %901 = vmatpush.msra.mxu0 %v900
        %v902 = vand.u32 %v319, 4294901760
        %v903 = vsub.f32 %v319, %v902
        %904 = vmatpush.msra.mxu0 %v903
        %v905 = vand.u32 %v318, 4294901760
        %v906 = vsub.f32 %v318, %v905
        %907 = vmatpush.msra.mxu0 %v906
        %v908 = vand.u32 %v317, 4294901760
        %v909 = vsub.f32 %v317, %v908
        %910 = vmatpush.msra.mxu0 %v909
        %v911 = vand.u32 %v316, 4294901760
        %v912 = vsub.f32 %v316, %v911
        %913 = vmatpush.msra.mxu0 %v912
        %v914 = vand.u32 %v315, 4294901760
        %v915 = vsub.f32 %v315, %v914
        %916 = vmatpush.msra.mxu0 %v915
        %v917 = vand.u32 %v314, 4294901760
        %v918 = vsub.f32 %v314, %v917
        %919 = vmatpush.msra.mxu0 %v918
        %v920 = vand.u32 %v313, 4294901760
        %v921 = vsub.f32 %v313, %v920
        %922 = vmatpush.msra.mxu0 %v921
        %v923 = vand.u32 %v329, 4294901760
        %v924 = vsub.f32 %v329, %v923
        %925 = vmatmul.f32.gmra.mxu0 %v924
        %v926 = vpop.f32.mrf.mxu0
        %v927 = vadd.f32 %v749, %v926
        %v928 = vand.u32 %v330, 4294901760
        %v929 = vsub.f32 %v330, %v928
        %930 = vmatmul.f32.gmra.mxu0 %v929
        %v931 = vpop.f32.mrf.mxu0
        %v932 = vadd.f32 %v753, %v931
        %v933 = vand.u32 %v331, 4294901760
        %v934 = vsub.f32 %v331, %v933
        %935 = vmatmul.f32.gmra.mxu0 %v934
        %v936 = vpop.f32.mrf.mxu0
        %v937 = vadd.f32 %v757, %v936
        %v938 = vand.u32 %v332, 4294901760
        %v939 = vsub.f32 %v332, %v938
        %940 = vmatmul.f32.gmra.mxu0 %v939
        %v941 = vpop.f32.mrf.mxu0
        %v942 = vadd.f32 %v761, %v941
        %v943 = vand.u32 %v333, 4294901760
        %v944 = vsub.f32 %v333, %v943
        %945 = vmatmul.f32.gmra.mxu0 %v944
        %v946 = vpop.f32.mrf.mxu0
        %v947 = vadd.f32 %v765, %v946
        %v948 = vand.u32 %v334, 4294901760
        %v949 = vsub.f32 %v334, %v948
        %950 = vmatmul.f32.gmra.mxu0 %v949
        %v951 = vpop.f32.mrf.mxu0
        %v952 = vadd.f32 %v769, %v951
        %v953 = vand.u32 %v335, 4294901760
        %v954 = vsub.f32 %v335, %v953
        %955 = vmatmul.f32.gmra.mxu0 %v954
        %v956 = vpop.f32.mrf.mxu0
        %v957 = vadd.f32 %v773, %v956
        %v958 = vand.u32 %v336, 4294901760
        %v959 = vsub.f32 %v336, %v958
        %960 = vmatmul.f32.gmra.mxu0 %v959
        %v961 = vpop.f32.mrf.mxu0
        %v962 = vadd.f32 %v777, %v961
        %v963 = vand.u32 %v337, 4294901760
        %v964 = vsub.f32 %v337, %v963
        %965 = vmatmul.f32.gmra.mxu0 %v964
        %v966 = vpop.f32.mrf.mxu0
        %v967 = vadd.f32 %v781, %v966
        %v968 = vand.u32 %v338, 4294901760
        %v969 = vsub.f32 %v338, %v968
        %970 = vmatmul.f32.gmra.mxu0 %v969
        %v971 = vpop.f32.mrf.mxu0
        %v972 = vadd.f32 %v785, %v971
        %v973 = vand.u32 %v339, 4294901760
        %v974 = vsub.f32 %v339, %v973
        %975 = vmatmul.f32.gmra.mxu0 %v974
        %v976 = vpop.f32.mrf.mxu0
        %v977 = vadd.f32 %v789, %v976
        %v978 = vand.u32 %v340, 4294901760
        %v979 = vsub.f32 %v340, %v978
        %980 = vmatmul.f32.gmra.mxu0 %v979
        %v981 = vpop.f32.mrf.mxu0
        %v982 = vadd.f32 %v793, %v981
        %v983 = vand.u32 %v341, 4294901760
        %v984 = vsub.f32 %v341, %v983
        %985 = vmatmul.f32.gmra.mxu0 %v984
        %v986 = vpop.f32.mrf.mxu0
        %v987 = vadd.f32 %v797, %v986
        %v988 = vand.u32 %v342, 4294901760
        %v989 = vsub.f32 %v342, %v988
        %990 = vmatmul.f32.gmra.mxu0 %v989
        %v991 = vpop.f32.mrf.mxu0
        %v992 = vadd.f32 %v801, %v991
        %v993 = vand.u32 %v343, 4294901760
        %v994 = vsub.f32 %v343, %v993
        %995 = vmatmul.f32.gmra.mxu0 %v994
        %v996 = vpop.f32.mrf.mxu0
        %v997 = vadd.f32 %v805, %v996
        %v998 = vand.u32 %v344, 4294901760
        %v999 = vsub.f32 %v344, %v998
        %1000 = vmatmul.f32.gmra.mxu0 %v999
        %v1001 = vpop.f32.mrf.mxu0
        %v1002 = vadd.f32 %v809, %v1001
        %v1003 = vand.u32 %v345, 4294901760
        %v1004 = vsub.f32 %v345, %v1003
        %1005 = vmatmul.f32.gmra.mxu0 %v1004
        %v1006 = vpop.f32.mrf.mxu0
        %v1007 = vadd.f32 %v813, %v1006
        %v1008 = vand.u32 %v346, 4294901760
        %v1009 = vsub.f32 %v346, %v1008
        %1010 = vmatmul.f32.gmra.mxu0 %v1009
        %v1011 = vpop.f32.mrf.mxu0
        %v1012 = vadd.f32 %v817, %v1011
        %v1013 = vand.u32 %v347, 4294901760
        %v1014 = vsub.f32 %v347, %v1013
        %1015 = vmatmul.f32.gmra.mxu0 %v1014
        %v1016 = vpop.f32.mrf.mxu0
        %v1017 = vadd.f32 %v821, %v1016
        %v1018 = vand.u32 %v348, 4294901760
        %v1019 = vsub.f32 %v348, %v1018
        %1020 = vmatmul.f32.gmra.mxu0 %v1019
        %v1021 = vpop.f32.mrf.mxu0
        %v1022 = vadd.f32 %v825, %v1021
        %v1023 = vand.u32 %v349, 4294901760
        %v1024 = vsub.f32 %v349, %v1023
        %1025 = vmatmul.f32.gmra.mxu0 %v1024
        %v1026 = vpop.f32.mrf.mxu0
        %v1027 = vadd.f32 %v829, %v1026
        %v1028 = vand.u32 %v350, 4294901760
        %v1029 = vsub.f32 %v350, %v1028
        %1030 = vmatmul.f32.gmra.mxu0 %v1029
        %v1031 = vpop.f32.mrf.mxu0
        %v1032 = vadd.f32 %v833, %v1031
        %v1033 = vand.u32 %v351, 4294901760
        %v1034 = vsub.f32 %v351, %v1033
        %1035 = vmatmul.f32.gmra.mxu0 %v1034
        %v1036 = vpop.f32.mrf.mxu0
        %v1037 = vadd.f32 %v837, %v1036
        %v1038 = vand.u32 %v352, 4294901760
        %v1039 = vsub.f32 %v352, %v1038
        %1040 = vmatmul.f32.gmra.mxu0 %v1039
        %v1041 = vpop.f32.mrf.mxu0
        %v1042 = vadd.f32 %v841, %v1041
        %v1043 = vand.u32 %v353, 4294901760
        %v1044 = vsub.f32 %v353, %v1043
        %1045 = vmatmul.f32.gmra.mxu0 %v1044
        %v1046 = vpop.f32.mrf.mxu0
        %v1047 = vadd.f32 %v845, %v1046
        %v1048 = vand.u32 %v354, 4294901760
        %v1049 = vsub.f32 %v354, %v1048
        %1050 = vmatmul.f32.gmra.mxu0 %v1049
        %v1051 = vpop.f32.mrf.mxu0
        %v1052 = vadd.f32 %v849, %v1051
        %v1053 = vand.u32 %v355, 4294901760
        %v1054 = vsub.f32 %v355, %v1053
        %1055 = vmatmul.f32.gmra.mxu0 %v1054
        %v1056 = vpop.f32.mrf.mxu0
        %v1057 = vadd.f32 %v853, %v1056
        %v1058 = vand.u32 %v356, 4294901760
        %v1059 = vsub.f32 %v356, %v1058
        %1060 = vmatmul.f32.gmra.mxu0 %v1059
        %v1061 = vpop.f32.mrf.mxu0
        %v1062 = vadd.f32 %v857, %v1061
        %v1063 = vand.u32 %v357, 4294901760
        %v1064 = vsub.f32 %v357, %v1063
        %1065 = vmatmul.f32.gmra.mxu0 %v1064
        %v1066 = vpop.f32.mrf.mxu0
        %v1067 = vadd.f32 %v861, %v1066
        %v1068 = vand.u32 %v358, 4294901760
        %v1069 = vsub.f32 %v358, %v1068
        %1070 = vmatmul.f32.gmra.mxu0 %v1069
        %v1071 = vpop.f32.mrf.mxu0
        %v1072 = vadd.f32 %v865, %v1071
        %v1073 = vand.u32 %v359, 4294901760
        %v1074 = vsub.f32 %v359, %v1073
        %1075 = vmatmul.f32.gmra.mxu0 %v1074
        %v1076 = vpop.f32.mrf.mxu0
        %v1077 = vadd.f32 %v869, %v1076
        %v1078 = vand.u32 %v360, 4294901760
        %v1079 = vsub.f32 %v360, %v1078
        %1080 = vmatmul.f32.gmra.mxu0 %v1079
        %v1081 = vpop.f32.mrf.mxu0
        %v1082 = vadd.f32 %v873, %v1081
        %1083 = vdwg.mxu0
        %v1084 = vand.u32 %v328, 4294901760
        %1085 = vmatpush.msra.mxu0 %v1084
        %v1086 = vand.u32 %v327, 4294901760
        %1087 = vmatpush.msra.mxu0 %v1086
        %v1088 = vand.u32 %v326, 4294901760
        %1089 = vmatpush.msra.mxu0 %v1088
        %v1090 = vand.u32 %v325, 4294901760
        %1091 = vmatpush.msra.mxu0 %v1090
        %v1092 = vand.u32 %v324, 4294901760
        %1093 = vmatpush.msra.mxu0 %v1092
        %v1094 = vand.u32 %v323, 4294901760
        %1095 = vmatpush.msra.mxu0 %v1094
        %v1096 = vand.u32 %v322, 4294901760
        %1097 = vmatpush.msra.mxu0 %v1096
        %v1098 = vand.u32 %v321, 4294901760
        %1099 = vmatpush.msra.mxu0 %v1098
        %v1100 = vand.u32 %v320, 4294901760
        %1101 = vmatpush.msra.mxu0 %v1100
        %v1102 = vand.u32 %v319, 4294901760
        %1103 = vmatpush.msra.mxu0 %v1102
        %v1104 = vand.u32 %v318, 4294901760
        %1105 = vmatpush.msra.mxu0 %v1104
        %v1106 = vand.u32 %v317, 4294901760
        %1107 = vmatpush.msra.mxu0 %v1106
        %v1108 = vand.u32 %v316, 4294901760
        %1109 = vmatpush.msra.mxu0 %v1108
        %v1110 = vand.u32 %v315, 4294901760
        %1111 = vmatpush.msra.mxu0 %v1110
        %v1112 = vand.u32 %v314, 4294901760
        %1113 = vmatpush.msra.mxu0 %v1112
        %v1114 = vand.u32 %v313, 4294901760
        %1115 = vmatpush.msra.mxu0 %v1114
        %v1116 = vand.u32 %v329, 4294901760
        %v1117 = vsub.f32 %v329, %v1116
        %v1118 = vand.u32 %v1117, 4294901760
        %1119 = vmatmul.f32.gmra.mxu0 %v1118
        %v1120 = vpop.f32.mrf.mxu0
        %v1121 = vadd.f32 %v927, %v1120
        %v1122 = vand.u32 %v330, 4294901760
        %v1123 = vsub.f32 %v330, %v1122
        %v1124 = vand.u32 %v1123, 4294901760
        %1125 = vmatmul.f32.gmra.mxu0 %v1124
        %v1126 = vpop.f32.mrf.mxu0
        %v1127 = vadd.f32 %v932, %v1126
        %v1128 = vand.u32 %v331, 4294901760
        %v1129 = vsub.f32 %v331, %v1128
        %v1130 = vand.u32 %v1129, 4294901760
        %1131 = vmatmul.f32.gmra.mxu0 %v1130
        %v1132 = vpop.f32.mrf.mxu0
        %v1133 = vadd.f32 %v937, %v1132
        %v1134 = vand.u32 %v332, 4294901760
        %v1135 = vsub.f32 %v332, %v1134
        %v1136 = vand.u32 %v1135, 4294901760
        %1137 = vmatmul.f32.gmra.mxu0 %v1136
        %v1138 = vpop.f32.mrf.mxu0
        %v1139 = vadd.f32 %v942, %v1138
        %v1140 = vand.u32 %v333, 4294901760
        %v1141 = vsub.f32 %v333, %v1140
        %v1142 = vand.u32 %v1141, 4294901760
        %1143 = vmatmul.f32.gmra.mxu0 %v1142
        %v1144 = vpop.f32.mrf.mxu0
        %v1145 = vadd.f32 %v947, %v1144
        %v1146 = vand.u32 %v334, 4294901760
        %v1147 = vsub.f32 %v334, %v1146
        %v1148 = vand.u32 %v1147, 4294901760
        %1149 = vmatmul.f32.gmra.mxu0 %v1148
        %v1150 = vpop.f32.mrf.mxu0
        %v1151 = vadd.f32 %v952, %v1150
        %v1152 = vand.u32 %v335, 4294901760
        %v1153 = vsub.f32 %v335, %v1152
        %v1154 = vand.u32 %v1153, 4294901760
        %1155 = vmatmul.f32.gmra.mxu0 %v1154
        %v1156 = vpop.f32.mrf.mxu0
        %v1157 = vadd.f32 %v957, %v1156
        %v1158 = vand.u32 %v336, 4294901760
        %v1159 = vsub.f32 %v336, %v1158
        %v1160 = vand.u32 %v1159, 4294901760
        %1161 = vmatmul.f32.gmra.mxu0 %v1160
        %v1162 = vpop.f32.mrf.mxu0
        %v1163 = vadd.f32 %v962, %v1162
        %v1164 = vand.u32 %v337, 4294901760
        %v1165 = vsub.f32 %v337, %v1164
        %v1166 = vand.u32 %v1165, 4294901760
        %1167 = vmatmul.f32.gmra.mxu0 %v1166
        %v1168 = vpop.f32.mrf.mxu0
        %v1169 = vadd.f32 %v967, %v1168
        %v1170 = vand.u32 %v338, 4294901760
        %v1171 = vsub.f32 %v338, %v1170
        %v1172 = vand.u32 %v1171, 4294901760
        %1173 = vmatmul.f32.gmra.mxu0 %v1172
        %v1174 = vpop.f32.mrf.mxu0
        %v1175 = vadd.f32 %v972, %v1174
        %v1176 = vand.u32 %v339, 4294901760
        %v1177 = vsub.f32 %v339, %v1176
        %v1178 = vand.u32 %v1177, 4294901760
        %1179 = vmatmul.f32.gmra.mxu0 %v1178
        %v1180 = vpop.f32.mrf.mxu0
        %v1181 = vadd.f32 %v977, %v1180
        %v1182 = vand.u32 %v340, 4294901760
        %v1183 = vsub.f32 %v340, %v1182
        %v1184 = vand.u32 %v1183, 4294901760
        %1185 = vmatmul.f32.gmra.mxu0 %v1184
        %v1186 = vpop.f32.mrf.mxu0
        %v1187 = vadd.f32 %v982, %v1186
        %v1188 = vand.u32 %v341, 4294901760
        %v1189 = vsub.f32 %v341, %v1188
        %v1190 = vand.u32 %v1189, 4294901760
        %1191 = vmatmul.f32.gmra.mxu0 %v1190
        %v1192 = vpop.f32.mrf.mxu0
        %v1193 = vadd.f32 %v987, %v1192
        %v1194 = vand.u32 %v342, 4294901760
        %v1195 = vsub.f32 %v342, %v1194
        %v1196 = vand.u32 %v1195, 4294901760
        %1197 = vmatmul.f32.gmra.mxu0 %v1196
        %v1198 = vpop.f32.mrf.mxu0
        %v1199 = vadd.f32 %v992, %v1198
        %v1200 = vand.u32 %v343, 4294901760
        %v1201 = vsub.f32 %v343, %v1200
        %v1202 = vand.u32 %v1201, 4294901760
        %1203 = vmatmul.f32.gmra.mxu0 %v1202
        %v1204 = vpop.f32.mrf.mxu0
        %v1205 = vadd.f32 %v997, %v1204
        %v1206 = vand.u32 %v344, 4294901760
        %v1207 = vsub.f32 %v344, %v1206
        %v1208 = vand.u32 %v1207, 4294901760
        %1209 = vmatmul.f32.gmra.mxu0 %v1208
        %v1210 = vpop.f32.mrf.mxu0
        %v1211 = vadd.f32 %v1002, %v1210
        %v1212 = vand.u32 %v345, 4294901760
        %v1213 = vsub.f32 %v345, %v1212
        %v1214 = vand.u32 %v1213, 4294901760
        %1215 = vmatmul.f32.gmra.mxu0 %v1214
        %v1216 = vpop.f32.mrf.mxu0
        %v1217 = vadd.f32 %v1007, %v1216
        %v1218 = vand.u32 %v346, 4294901760
        %v1219 = vsub.f32 %v346, %v1218
        %v1220 = vand.u32 %v1219, 4294901760
        %1221 = vmatmul.f32.gmra.mxu0 %v1220
        %v1222 = vpop.f32.mrf.mxu0
        %v1223 = vadd.f32 %v1012, %v1222
        %v1224 = vand.u32 %v347, 4294901760
        %v1225 = vsub.f32 %v347, %v1224
        %v1226 = vand.u32 %v1225, 4294901760
        %1227 = vmatmul.f32.gmra.mxu0 %v1226
        %v1228 = vpop.f32.mrf.mxu0
        %v1229 = vadd.f32 %v1017, %v1228
        %v1230 = vand.u32 %v348, 4294901760
        %v1231 = vsub.f32 %v348, %v1230
        %v1232 = vand.u32 %v1231, 4294901760
        %1233 = vmatmul.f32.gmra.mxu0 %v1232
        %v1234 = vpop.f32.mrf.mxu0
        %v1235 = vadd.f32 %v1022, %v1234
        %v1236 = vand.u32 %v349, 4294901760
        %v1237 = vsub.f32 %v349, %v1236
        %v1238 = vand.u32 %v1237, 4294901760
        %1239 = vmatmul.f32.gmra.mxu0 %v1238
        %v1240 = vpop.f32.mrf.mxu0
        %v1241 = vadd.f32 %v1027, %v1240
        %v1242 = vand.u32 %v350, 4294901760
        %v1243 = vsub.f32 %v350, %v1242
        %v1244 = vand.u32 %v1243, 4294901760
        %1245 = vmatmul.f32.gmra.mxu0 %v1244
        %v1246 = vpop.f32.mrf.mxu0
        %v1247 = vadd.f32 %v1032, %v1246
        %v1248 = vand.u32 %v351, 4294901760
        %v1249 = vsub.f32 %v351, %v1248
        %v1250 = vand.u32 %v1249, 4294901760
        %1251 = vmatmul.f32.gmra.mxu0 %v1250
        %v1252 = vpop.f32.mrf.mxu0
        %v1253 = vadd.f32 %v1037, %v1252
        %v1254 = vand.u32 %v352, 4294901760
        %v1255 = vsub.f32 %v352, %v1254
        %v1256 = vand.u32 %v1255, 4294901760
        %1257 = vmatmul.f32.gmra.mxu0 %v1256
        %v1258 = vpop.f32.mrf.mxu0
        %v1259 = vadd.f32 %v1042, %v1258
        %v1260 = vand.u32 %v353, 4294901760
        %v1261 = vsub.f32 %v353, %v1260
        %v1262 = vand.u32 %v1261, 4294901760
        %1263 = vmatmul.f32.gmra.mxu0 %v1262
        %v1264 = vpop.f32.mrf.mxu0
        %v1265 = vadd.f32 %v1047, %v1264
        %v1266 = vand.u32 %v354, 4294901760
        %v1267 = vsub.f32 %v354, %v1266
        %v1268 = vand.u32 %v1267, 4294901760
        %1269 = vmatmul.f32.gmra.mxu0 %v1268
        %v1270 = vpop.f32.mrf.mxu0
        %v1271 = vadd.f32 %v1052, %v1270
        %v1272 = vand.u32 %v355, 4294901760
        %v1273 = vsub.f32 %v355, %v1272
        %v1274 = vand.u32 %v1273, 4294901760
        %1275 = vmatmul.f32.gmra.mxu0 %v1274
        %v1276 = vpop.f32.mrf.mxu0
        %v1277 = vadd.f32 %v1057, %v1276
        %v1278 = vand.u32 %v356, 4294901760
        %v1279 = vsub.f32 %v356, %v1278
        %v1280 = vand.u32 %v1279, 4294901760
        %1281 = vmatmul.f32.gmra.mxu0 %v1280
        %v1282 = vpop.f32.mrf.mxu0
        %v1283 = vadd.f32 %v1062, %v1282
        %v1284 = vand.u32 %v357, 4294901760
        %v1285 = vsub.f32 %v357, %v1284
        %v1286 = vand.u32 %v1285, 4294901760
        %1287 = vmatmul.f32.gmra.mxu0 %v1286
        %v1288 = vpop.f32.mrf.mxu0
        %v1289 = vadd.f32 %v1067, %v1288
        %v1290 = vand.u32 %v358, 4294901760
        %v1291 = vsub.f32 %v358, %v1290
        %v1292 = vand.u32 %v1291, 4294901760
        %1293 = vmatmul.f32.gmra.mxu0 %v1292
        %v1294 = vpop.f32.mrf.mxu0
        %v1295 = vadd.f32 %v1072, %v1294
        %v1296 = vand.u32 %v359, 4294901760
        %v1297 = vsub.f32 %v359, %v1296
        %v1298 = vand.u32 %v1297, 4294901760
        %1299 = vmatmul.f32.gmra.mxu0 %v1298
        %v1300 = vpop.f32.mrf.mxu0
        %v1301 = vadd.f32 %v1077, %v1300
        %v1302 = vand.u32 %v360, 4294901760
        %v1303 = vsub.f32 %v360, %v1302
        %v1304 = vand.u32 %v1303, 4294901760
        %1305 = vmatmul.f32.gmra.mxu0 %v1304
        %v1306 = vpop.f32.mrf.mxu0
        %v1307 = vadd.f32 %v1082, %v1306
        %1308 = vdwg.mxu0
        %v1309 = vand.u32 %v328, 4294901760
        %v1310 = vsub.f32 %v328, %v1309
        %v1311 = vand.u32 %v1310, 4294901760
        %1312 = vmatpush.msra.mxu0 %v1311
        %v1313 = vand.u32 %v327, 4294901760
        %v1314 = vsub.f32 %v327, %v1313
        %v1315 = vand.u32 %v1314, 4294901760
        %1316 = vmatpush.msra.mxu0 %v1315
        %v1317 = vand.u32 %v326, 4294901760
        %v1318 = vsub.f32 %v326, %v1317
        %v1319 = vand.u32 %v1318, 4294901760
        %1320 = vmatpush.msra.mxu0 %v1319
        %v1321 = vand.u32 %v325, 4294901760
        %v1322 = vsub.f32 %v325, %v1321
        %v1323 = vand.u32 %v1322, 4294901760
        %1324 = vmatpush.msra.mxu0 %v1323
        %v1325 = vand.u32 %v324, 4294901760
        %v1326 = vsub.f32 %v324, %v1325
        %v1327 = vand.u32 %v1326, 4294901760
        %1328 = vmatpush.msra.mxu0 %v1327
        %v1329 = vand.u32 %v323, 4294901760
        %v1330 = vsub.f32 %v323, %v1329
        %v1331 = vand.u32 %v1330, 4294901760
        %1332 = vmatpush.msra.mxu0 %v1331
        %v1333 = vand.u32 %v322, 4294901760
        %v1334 = vsub.f32 %v322, %v1333
        %v1335 = vand.u32 %v1334, 4294901760
        %1336 = vmatpush.msra.mxu0 %v1335
        %v1337 = vand.u32 %v321, 4294901760
        %v1338 = vsub.f32 %v321, %v1337
        %v1339 = vand.u32 %v1338, 4294901760
        %1340 = vmatpush.msra.mxu0 %v1339
        %v1341 = vand.u32 %v320, 4294901760
        %v1342 = vsub.f32 %v320, %v1341
        %v1343 = vand.u32 %v1342, 4294901760
        %1344 = vmatpush.msra.mxu0 %v1343
        %v1345 = vand.u32 %v319, 4294901760
        %v1346 = vsub.f32 %v319, %v1345
        %v1347 = vand.u32 %v1346, 4294901760
        %1348 = vmatpush.msra.mxu0 %v1347
        %v1349 = vand.u32 %v318, 4294901760
        %v1350 = vsub.f32 %v318, %v1349
        %v1351 = vand.u32 %v1350, 4294901760
        %1352 = vmatpush.msra.mxu0 %v1351
        %v1353 = vand.u32 %v317, 4294901760
        %v1354 = vsub.f32 %v317, %v1353
        %v1355 = vand.u32 %v1354, 4294901760
        %1356 = vmatpush.msra.mxu0 %v1355
        %v1357 = vand.u32 %v316, 4294901760
        %v1358 = vsub.f32 %v316, %v1357
        %v1359 = vand.u32 %v1358, 4294901760
        %1360 = vmatpush.msra.mxu0 %v1359
        %v1361 = vand.u32 %v315, 4294901760
        %v1362 = vsub.f32 %v315, %v1361
        %v1363 = vand.u32 %v1362, 4294901760
        %1364 = vmatpush.msra.mxu0 %v1363
        %v1365 = vand.u32 %v314, 4294901760
        %v1366 = vsub.f32 %v314, %v1365
        %v1367 = vand.u32 %v1366, 4294901760
        %1368 = vmatpush.msra.mxu0 %v1367
        %v1369 = vand.u32 %v313, 4294901760
        %v1370 = vsub.f32 %v313, %v1369
        %v1371 = vand.u32 %v1370, 4294901760
        %1372 = vmatpush.msra.mxu0 %v1371
        %v1373 = vand.u32 %v329, 4294901760
        %1374 = vmatmul.f32.gmra.mxu0 %v1373
        %v1375 = vpop.f32.mrf.mxu0
        %v1376 = vadd.f32 %v1121, %v1375
        %v1377 = vand.u32 %v330, 4294901760
        %1378 = vmatmul.f32.gmra.mxu0 %v1377
        %v1379 = vpop.f32.mrf.mxu0
        %v1380 = vadd.f32 %v1127, %v1379
        %v1381 = vand.u32 %v331, 4294901760
        %1382 = vmatmul.f32.gmra.mxu0 %v1381
        %v1383 = vpop.f32.mrf.mxu0
        %v1384 = vadd.f32 %v1133, %v1383
        %v1385 = vand.u32 %v332, 4294901760
        %1386 = vmatmul.f32.gmra.mxu0 %v1385
        %v1387 = vpop.f32.mrf.mxu0
        %v1388 = vadd.f32 %v1139, %v1387
        %v1389 = vand.u32 %v333, 4294901760
        %1390 = vmatmul.f32.gmra.mxu0 %v1389
        %v1391 = vpop.f32.mrf.mxu0
        %v1392 = vadd.f32 %v1145, %v1391
        %v1393 = vand.u32 %v334, 4294901760
        %1394 = vmatmul.f32.gmra.mxu0 %v1393
        %v1395 = vpop.f32.mrf.mxu0
        %v1396 = vadd.f32 %v1151, %v1395
        %v1397 = vand.u32 %v335, 4294901760
        %1398 = vmatmul.f32.gmra.mxu0 %v1397
        %v1399 = vpop.f32.mrf.mxu0
        %v1400 = vadd.f32 %v1157, %v1399
        %v1401 = vand.u32 %v336, 4294901760
        %1402 = vmatmul.f32.gmra.mxu0 %v1401
        %v1403 = vpop.f32.mrf.mxu0
        %v1404 = vadd.f32 %v1163, %v1403
        %v1405 = vand.u32 %v337, 4294901760
        %1406 = vmatmul.f32.gmra.mxu0 %v1405
        %v1407 = vpop.f32.mrf.mxu0
        %v1408 = vadd.f32 %v1169, %v1407
        %v1409 = vand.u32 %v338, 4294901760
        %1410 = vmatmul.f32.gmra.mxu0 %v1409
        %v1411 = vpop.f32.mrf.mxu0
        %v1412 = vadd.f32 %v1175, %v1411
        %v1413 = vand.u32 %v339, 4294901760
        %1414 = vmatmul.f32.gmra.mxu0 %v1413
        %v1415 = vpop.f32.mrf.mxu0
        %v1416 = vadd.f32 %v1181, %v1415
        %v1417 = vand.u32 %v340, 4294901760
        %1418 = vmatmul.f32.gmra.mxu0 %v1417
        %v1419 = vpop.f32.mrf.mxu0
        %v1420 = vadd.f32 %v1187, %v1419
        %v1421 = vand.u32 %v341, 4294901760
        %1422 = vmatmul.f32.gmra.mxu0 %v1421
        %v1423 = vpop.f32.mrf.mxu0
        %v1424 = vadd.f32 %v1193, %v1423
        %v1425 = vand.u32 %v342, 4294901760
        %1426 = vmatmul.f32.gmra.mxu0 %v1425
        %v1427 = vpop.f32.mrf.mxu0
        %v1428 = vadd.f32 %v1199, %v1427
        %v1429 = vand.u32 %v343, 4294901760
        %1430 = vmatmul.f32.gmra.mxu0 %v1429
        %v1431 = vpop.f32.mrf.mxu0
        %v1432 = vadd.f32 %v1205, %v1431
        %v1433 = vand.u32 %v344, 4294901760
        %1434 = vmatmul.f32.gmra.mxu0 %v1433
        %v1435 = vpop.f32.mrf.mxu0
        %v1436 = vadd.f32 %v1211, %v1435
        %v1437 = vand.u32 %v345, 4294901760
        %1438 = vmatmul.f32.gmra.mxu0 %v1437
        %v1439 = vpop.f32.mrf.mxu0
        %v1440 = vadd.f32 %v1217, %v1439
        %v1441 = vand.u32 %v346, 4294901760
        %1442 = vmatmul.f32.gmra.mxu0 %v1441
        %v1443 = vpop.f32.mrf.mxu0
        %v1444 = vadd.f32 %v1223, %v1443
        %v1445 = vand.u32 %v347, 4294901760
        %1446 = vmatmul.f32.gmra.mxu0 %v1445
        %v1447 = vpop.f32.mrf.mxu0
        %v1448 = vadd.f32 %v1229, %v1447
        %v1449 = vand.u32 %v348, 4294901760
        %1450 = vmatmul.f32.gmra.mxu0 %v1449
        %v1451 = vpop.f32.mrf.mxu0
        %v1452 = vadd.f32 %v1235, %v1451
        %v1453 = vand.u32 %v349, 4294901760
        %1454 = vmatmul.f32.gmra.mxu0 %v1453
        %v1455 = vpop.f32.mrf.mxu0
        %v1456 = vadd.f32 %v1241, %v1455
        %v1457 = vand.u32 %v350, 4294901760
        %1458 = vmatmul.f32.gmra.mxu0 %v1457
        %v1459 = vpop.f32.mrf.mxu0
        %v1460 = vadd.f32 %v1247, %v1459
        %v1461 = vand.u32 %v351, 4294901760
        %1462 = vmatmul.f32.gmra.mxu0 %v1461
        %v1463 = vpop.f32.mrf.mxu0
        %v1464 = vadd.f32 %v1253, %v1463
        %v1465 = vand.u32 %v352, 4294901760
        %1466 = vmatmul.f32.gmra.mxu0 %v1465
        %v1467 = vpop.f32.mrf.mxu0
        %v1468 = vadd.f32 %v1259, %v1467
        %v1469 = vand.u32 %v353, 4294901760
        %1470 = vmatmul.f32.gmra.mxu0 %v1469
        %v1471 = vpop.f32.mrf.mxu0
        %v1472 = vadd.f32 %v1265, %v1471
        %v1473 = vand.u32 %v354, 4294901760
        %1474 = vmatmul.f32.gmra.mxu0 %v1473
        %v1475 = vpop.f32.mrf.mxu0
        %v1476 = vadd.f32 %v1271, %v1475
        %v1477 = vand.u32 %v355, 4294901760
        %1478 = vmatmul.f32.gmra.mxu0 %v1477
        %v1479 = vpop.f32.mrf.mxu0
        %v1480 = vadd.f32 %v1277, %v1479
        %v1481 = vand.u32 %v356, 4294901760
        %1482 = vmatmul.f32.gmra.mxu0 %v1481
        %v1483 = vpop.f32.mrf.mxu0
        %v1484 = vadd.f32 %v1283, %v1483
        %v1485 = vand.u32 %v357, 4294901760
        %1486 = vmatmul.f32.gmra.mxu0 %v1485
        %v1487 = vpop.f32.mrf.mxu0
        %v1488 = vadd.f32 %v1289, %v1487
        %v1489 = vand.u32 %v358, 4294901760
        %1490 = vmatmul.f32.gmra.mxu0 %v1489
        %v1491 = vpop.f32.mrf.mxu0
        %v1492 = vadd.f32 %v1295, %v1491
        %v1493 = vand.u32 %v359, 4294901760
        %1494 = vmatmul.f32.gmra.mxu0 %v1493
        %v1495 = vpop.f32.mrf.mxu0
        %v1496 = vadd.f32 %v1301, %v1495
        %v1497 = vand.u32 %v360, 4294901760
        %1498 = vmatmul.f32.gmra.mxu0 %v1497
        %v1499 = vpop.f32.mrf.mxu0
        %v1500 = vadd.f32 %v1307, %v1499
        %1501 = vdwg.mxu0
        %v1502 = vand.u32 %v328, 4294901760
        %1503 = vmatpush.msra.mxu0 %v1502
        %v1504 = vand.u32 %v327, 4294901760
        %1505 = vmatpush.msra.mxu0 %v1504
        %v1506 = vand.u32 %v326, 4294901760
        %1507 = vmatpush.msra.mxu0 %v1506
        %v1508 = vand.u32 %v325, 4294901760
        %1509 = vmatpush.msra.mxu0 %v1508
        %v1510 = vand.u32 %v324, 4294901760
        %1511 = vmatpush.msra.mxu0 %v1510
        %v1512 = vand.u32 %v323, 4294901760
        %1513 = vmatpush.msra.mxu0 %v1512
        %v1514 = vand.u32 %v322, 4294901760
        %1515 = vmatpush.msra.mxu0 %v1514
        %v1516 = vand.u32 %v321, 4294901760
        %1517 = vmatpush.msra.mxu0 %v1516
        %v1518 = vand.u32 %v320, 4294901760
        %1519 = vmatpush.msra.mxu0 %v1518
        %v1520 = vand.u32 %v319, 4294901760
        %1521 = vmatpush.msra.mxu0 %v1520
        %v1522 = vand.u32 %v318, 4294901760
        %1523 = vmatpush.msra.mxu0 %v1522
        %v1524 = vand.u32 %v317, 4294901760
        %1525 = vmatpush.msra.mxu0 %v1524
        %v1526 = vand.u32 %v316, 4294901760
        %1527 = vmatpush.msra.mxu0 %v1526
        %v1528 = vand.u32 %v315, 4294901760
        %1529 = vmatpush.msra.mxu0 %v1528
        %v1530 = vand.u32 %v314, 4294901760
        %1531 = vmatpush.msra.mxu0 %v1530
        %v1532 = vand.u32 %v313, 4294901760
        %1533 = vmatpush.msra.mxu0 %v1532
        %v1534 = vand.u32 %v329, 4294901760
        %1535 = vmatmul.f32.gmra.mxu0 %v1534
        %v1536 = vpop.f32.mrf.mxu0
        %v1537 = vadd.f32 %v1376, %v1536
        %v1538 = vand.u32 %v330, 4294901760
        %1539 = vmatmul.f32.gmra.mxu0 %v1538
        %v1540 = vpop.f32.mrf.mxu0
        %v1541 = vadd.f32 %v1380, %v1540
        %v1542 = vand.u32 %v331, 4294901760
        %1543 = vmatmul.f32.gmra.mxu0 %v1542
        %v1544 = vpop.f32.mrf.mxu0
        %v1545 = vadd.f32 %v1384, %v1544
        %v1546 = vand.u32 %v332, 4294901760
        %1547 = vmatmul.f32.gmra.mxu0 %v1546
        %v1548 = vpop.f32.mrf.mxu0
        %v1549 = vadd.f32 %v1388, %v1548
        %v1550 = vand.u32 %v333, 4294901760
        %1551 = vmatmul.f32.gmra.mxu0 %v1550
        %v1552 = vpop.f32.mrf.mxu0
        %v1553 = vadd.f32 %v1392, %v1552
        %v1554 = vand.u32 %v334, 4294901760
        %1555 = vmatmul.f32.gmra.mxu0 %v1554
        %v1556 = vpop.f32.mrf.mxu0
        %v1557 = vadd.f32 %v1396, %v1556
        %v1558 = vand.u32 %v335, 4294901760
        %1559 = vmatmul.f32.gmra.mxu0 %v1558
        %v1560 = vpop.f32.mrf.mxu0
        %v1561 = vadd.f32 %v1400, %v1560
        %v1562 = vand.u32 %v336, 4294901760
        %1563 = vmatmul.f32.gmra.mxu0 %v1562
        %v1564 = vpop.f32.mrf.mxu0
        %v1565 = vadd.f32 %v1404, %v1564
        %v1566 = vand.u32 %v337, 4294901760
        %1567 = vmatmul.f32.gmra.mxu0 %v1566
        %v1568 = vpop.f32.mrf.mxu0
        %v1569 = vadd.f32 %v1408, %v1568
        %v1570 = vand.u32 %v338, 4294901760
        %1571 = vmatmul.f32.gmra.mxu0 %v1570
        %v1572 = vpop.f32.mrf.mxu0
        %v1573 = vadd.f32 %v1412, %v1572
        %v1574 = vand.u32 %v339, 4294901760
        %1575 = vmatmul.f32.gmra.mxu0 %v1574
        %v1576 = vpop.f32.mrf.mxu0
        %v1577 = vadd.f32 %v1416, %v1576
        %v1578 = vand.u32 %v340, 4294901760
        %1579 = vmatmul.f32.gmra.mxu0 %v1578
        %v1580 = vpop.f32.mrf.mxu0
        %v1581 = vadd.f32 %v1420, %v1580
        %v1582 = vand.u32 %v341, 4294901760
        %1583 = vmatmul.f32.gmra.mxu0 %v1582
        %v1584 = vpop.f32.mrf.mxu0
        %v1585 = vadd.f32 %v1424, %v1584
        %v1586 = vand.u32 %v342, 4294901760
        %1587 = vmatmul.f32.gmra.mxu0 %v1586
        %v1588 = vpop.f32.mrf.mxu0
        %v1589 = vadd.f32 %v1428, %v1588
        %v1590 = vand.u32 %v343, 4294901760
        %1591 = vmatmul.f32.gmra.mxu0 %v1590
        %v1592 = vpop.f32.mrf.mxu0
        %v1593 = vadd.f32 %v1432, %v1592
        %v1594 = vand.u32 %v344, 4294901760
        %1595 = vmatmul.f32.gmra.mxu0 %v1594
        %v1596 = vpop.f32.mrf.mxu0
        %v1597 = vadd.f32 %v1436, %v1596
        %v1598 = vand.u32 %v345, 4294901760
        %1599 = vmatmul.f32.gmra.mxu0 %v1598
        %v1600 = vpop.f32.mrf.mxu0
        %v1601 = vadd.f32 %v1440, %v1600
        %v1602 = vand.u32 %v346, 4294901760
        %1603 = vmatmul.f32.gmra.mxu0 %v1602
        %v1604 = vpop.f32.mrf.mxu0
        %v1605 = vadd.f32 %v1444, %v1604
        %v1606 = vand.u32 %v347, 4294901760
        %1607 = vmatmul.f32.gmra.mxu0 %v1606
        %v1608 = vpop.f32.mrf.mxu0
        %v1609 = vadd.f32 %v1448, %v1608
        %v1610 = vand.u32 %v348, 4294901760
        %1611 = vmatmul.f32.gmra.mxu0 %v1610
        %v1612 = vpop.f32.mrf.mxu0
        %v1613 = vadd.f32 %v1452, %v1612
        %v1614 = vand.u32 %v349, 4294901760
        %1615 = vmatmul.f32.gmra.mxu0 %v1614
        %v1616 = vpop.f32.mrf.mxu0
        %v1617 = vadd.f32 %v1456, %v1616
        %v1618 = vand.u32 %v350, 4294901760
        %1619 = vmatmul.f32.gmra.mxu0 %v1618
        %v1620 = vpop.f32.mrf.mxu0
        %v1621 = vadd.f32 %v1460, %v1620
        %v1622 = vand.u32 %v351, 4294901760
        %1623 = vmatmul.f32.gmra.mxu0 %v1622
        %v1624 = vpop.f32.mrf.mxu0
        %v1625 = vadd.f32 %v1464, %v1624
        %v1626 = vand.u32 %v352, 4294901760
        %1627 = vmatmul.f32.gmra.mxu0 %v1626
        %v1628 = vpop.f32.mrf.mxu0
        %v1629 = vadd.f32 %v1468, %v1628
        %v1630 = vand.u32 %v353, 4294901760
        %1631 = vmatmul.f32.gmra.mxu0 %v1630
        %v1632 = vpop.f32.mrf.mxu0
        %v1633 = vadd.f32 %v1472, %v1632
        %v1634 = vand.u32 %v354, 4294901760
        %1635 = vmatmul.f32.gmra.mxu0 %v1634
        %v1636 = vpop.f32.mrf.mxu0
        %v1637 = vadd.f32 %v1476, %v1636
        %v1638 = vand.u32 %v355, 4294901760
        %1639 = vmatmul.f32.gmra.mxu0 %v1638
        %v1640 = vpop.f32.mrf.mxu0
        %v1641 = vadd.f32 %v1480, %v1640
        %v1642 = vand.u32 %v356, 4294901760
        %1643 = vmatmul.f32.gmra.mxu0 %v1642
        %v1644 = vpop.f32.mrf.mxu0
        %v1645 = vadd.f32 %v1484, %v1644
        %v1646 = vand.u32 %v357, 4294901760
        %1647 = vmatmul.f32.gmra.mxu0 %v1646
        %v1648 = vpop.f32.mrf.mxu0
        %v1649 = vadd.f32 %v1488, %v1648
        %v1650 = vand.u32 %v358, 4294901760
        %1651 = vmatmul.f32.gmra.mxu0 %v1650
        %v1652 = vpop.f32.mrf.mxu0
        %v1653 = vadd.f32 %v1492, %v1652
        %v1654 = vand.u32 %v359, 4294901760
        %1655 = vmatmul.f32.gmra.mxu0 %v1654
        %v1656 = vpop.f32.mrf.mxu0
        %v1657 = vadd.f32 %v1496, %v1656
        %v1658 = vand.u32 %v360, 4294901760
        %1659 = vmatmul.f32.gmra.mxu0 %v1658
        %v1660 = vpop.f32.mrf.mxu0
        %v1661 = vadd.f32 %v1500, %v1660
        %1662 = vdwg.mxu0
        %v1663 = vmul.f32 %v1537, %v1537
        %v1664 = vmul.f32 %v1541, %v1541
        %v1665 = vmul.f32 %v1545, %v1545
        %v1666 = vmul.f32 %v1549, %v1549
        %v1667 = vmul.f32 %v1553, %v1553
        %v1668 = vmul.f32 %v1557, %v1557
        %v1669 = vmul.f32 %v1561, %v1561
        %v1670 = vmul.f32 %v1565, %v1565
        %v1671 = vmul.f32 %v1569, %v1569
        %v1672 = vmul.f32 %v1573, %v1573
        %v1673 = vmul.f32 %v1577, %v1577
        %v1674 = vmul.f32 %v1581, %v1581
        %v1675 = vmul.f32 %v1585, %v1585
        %v1676 = vmul.f32 %v1589, %v1589
        %v1677 = vmul.f32 %v1593, %v1593
        %v1678 = vmul.f32 %v1597, %v1597
        %v1679 = vmul.f32 %v1601, %v1601
        %v1680 = vmul.f32 %v1605, %v1605
        %v1681 = vmul.f32 %v1609, %v1609
        %v1682 = vmul.f32 %v1613, %v1613
        %v1683 = vmul.f32 %v1617, %v1617
        %v1684 = vmul.f32 %v1621, %v1621
        %v1685 = vmul.f32 %v1625, %v1625
        %v1686 = vmul.f32 %v1629, %v1629
        %v1687 = vmul.f32 %v1633, %v1633
        %v1688 = vmul.f32 %v1637, %v1637
        %v1689 = vmul.f32 %v1641, %v1641
        %v1690 = vmul.f32 %v1645, %v1645
        %v1691 = vmul.f32 %v1649, %v1649
        %v1692 = vmul.f32 %v1653, %v1653
        %v1693 = vmul.f32 %v1657, %v1657
        %v1694 = vmul.f32 %v1661, %v1661
        %v1695 = vadd.f32 %v1663, %v1679
        %v1696 = vadd.f32 %v1664, %v1680
        %v1697 = vadd.f32 %v1665, %v1681
        %v1698 = vadd.f32 %v1666, %v1682
        %v1699 = vadd.f32 %v1667, %v1683
        %v1700 = vadd.f32 %v1668, %v1684
        %v1701 = vadd.f32 %v1669, %v1685
        %v1702 = vadd.f32 %v1670, %v1686
        %v1703 = vadd.f32 %v1671, %v1687
        %v1704 = vadd.f32 %v1672, %v1688
        %v1705 = vadd.f32 %v1673, %v1689
        %v1706 = vadd.f32 %v1674, %v1690
        %v1707 = vadd.f32 %v1675, %v1691
        %v1708 = vadd.f32 %v1676, %v1692
        %v1709 = vadd.f32 %v1677, %v1693
        %v1710 = vadd.f32 %v1678, %v1694
        %v1711 = vld [vmem:[%s2] sm:$0xff]
        %v1712 = vld [vmem:[%s2 + $0x8] sm:$0xff]
        %v1713 = vld [vmem:[%s2 + $0x10] sm:$0xff]
        %v1714 = vld [vmem:[%s2 + $0x18] sm:$0xff]
        %1715 = vmatpush.msra.mxu0 %v1710
        %1716 = vmatpush.msra.mxu0 %v1709
        %1717 = vmatpush.msra.mxu0 %v1708
        %1718 = vmatpush.msra.mxu0 %v1707
        %1719 = vmatpush.msra.mxu0 %v1706
        %1720 = vmatpush.msra.mxu0 %v1705
        %1721 = vmatpush.msra.mxu0 %v1704
        %1722 = vmatpush.msra.mxu0 %v1703
        %1723 = vmatpush.msra.mxu0 %v1702
        %1724 = vmatpush.msra.mxu0 %v1701
        %1725 = vmatpush.msra.mxu0 %v1700
        %1726 = vmatpush.msra.mxu0 %v1699
        %1727 = vmatpush.msra.mxu0 %v1698
        %1728 = vmatpush.msra.mxu0 %v1697
        %1729 = vmatpush.msra.mxu0 %v1696
        %1730 = vmatpush.msra.mxu0 %v1695
        %1731 = vmatmul.f32.gmra.mxu0 %v1711
        %v1732 = vpop.f32.mrf.mxu0
        %v1733 = vadd.f32 0.0, %v1732
        %1734 = vmatmul.f32.gmra.mxu0 %v1712
        %v1735 = vpop.f32.mrf.mxu0
        %v1736 = vadd.f32 0.0, %v1735
        %1737 = vmatmul.f32.gmra.mxu0 %v1713
        %v1738 = vpop.f32.mrf.mxu0
        %v1739 = vadd.f32 0.0, %v1738
        %1740 = vmatmul.f32.gmra.mxu0 %v1714
        %v1741 = vpop.f32.mrf.mxu0
        %v1742 = vadd.f32 0.0, %v1741
        %1743 = vdwg.mxu0
        %v1744 = vmax.f32 %v1733, 1e-10
        %v1745 = vmax.f32 %v1736, 1e-10
        %v1746 = vmax.f32 %v1739, 1e-10
        %v1747 = vmax.f32 %v1742, 1e-10
        %v1748 = vlog2.pop %v1744
        %v1749 = vmul.f32 %v1748, 0.6931472
        %v1750 = vlog2.pop %v1745
        %v1751 = vmul.f32 %v1750, 0.6931472
        %v1752 = vlog2.pop %v1746
        %v1753 = vmul.f32 %v1752, 0.6931472
        %v1754 = vlog2.pop %v1747
        %v1755 = vmul.f32 %v1754, 0.6931472
        %v1756 = vmul.f32 %v1749, 0.4342945
        %v1757 = vmul.f32 %v1751, 0.4342945
        %v1758 = vmul.f32 %v1753, 0.4342945
        %v1759 = vmul.f32 %v1755, 0.4342945
        %v1760 = vmul.f32 %v1756, 10.0
        %v1761 = vmul.f32 %v1757, 10.0
        %v1762 = vmul.f32 %v1758, 10.0
        %v1763 = vmul.f32 %v1759, 10.0
        %s1764 = smul.u32 %s23, 128
        %v1765 = vlaneseq
        %v1766 = vand.u32 %v1765, 127
        %v1767 = vstv %s1764
        %v1768 = vadd.s32 %v1767, %v1766
        %vm1769 = vcmp.lt.s32.totalorder %v1768, 129
        %v1770 = vsel %vm1769, %v1760, -inf
        %v1771 = vsel %vm1769, %v1761, -inf
        %v1772 = vsel %vm1769, %v1762, -inf
        %v1773 = vsel %vm1769, %v1763, -inf
        %v1774 = vmax.f32 %v1770, %v1771
        %v1775 = vmax.f32 %v1772, %v1773
        %v1776 = vmax.f32 %v1774, %v1775
        %1777 = vmax.xlane.f32.xlu0 %v1776
        %v1778 = vpop.xlane.xlu0 %1777
        %v1779 = vrot.slane %v1778, 4
        %v1780 = vmax.f32 %v1778, %v1779
        %v1781 = vrot.slane %v1780, 2
        %v1782 = vmax.f32 %v1780, %v1781
        %v1783 = vrot.slane %v1782, 1
        %v1784 = vmax.f32 %v1782, %v1783
        %s1785 = vtos %v1784
        %v1786 = vld [vmem:[#allocation3] sm:$0x1]
        %v1787 = vstv %s1785
        %v1788 = vmax.f32 %v1786, %v1787
        %vm1789 = vcmask 0
        %1790 = vst.msk [vmem:[#allocation3] sm:$0x1] %vm1789, %v1788
        %s1791 = smul.u32 %s23, 32
        %s1792 = scalar_lea.vmem [#allocation2], %s1791
        %1793 = vst [vmem:[%s1792] sm:$0xff] %v1760
        %1794 = vst [vmem:[%s1792 + $0x8] sm:$0xff] %v1761
        %1795 = vst [vmem:[%s1792 + $0x10] sm:$0xff] %v1762
        %1796 = vst [vmem:[%s1792 + $0x18] sm:$0xff] %v1763
        %p1797 = scmp.eq.s32.totalorder %s23, 1
        // Predicated region
        $region79: #{mfcc_pallas.1} parent=69 // pred_check
          %p1798 = pneg %p1797
        $region80: #{mfcc_pallas.1} parent=69 // pred_check_branch
          %1800 = sbr.rel (%p1798) target = $region82
        $region81: #{mfcc_pallas.1} parent=69 // pred_region
          %v1801 = vld [vmem:[#allocation3] sm:$0x1]
          %v1802 = vsub.f32 %v1801, 80.0
          %v1803 = vld [vmem:[#allocation2] sm:$0xff]
          %v1804 = vld [vmem:[#allocation2 + $0x8] sm:$0xff]
          %v1805 = vld [vmem:[#allocation2 + $0x10] sm:$0xff]
          %v1806 = vld [vmem:[#allocation2 + $0x18] sm:$0xff]
          %v1808 = vperm.slane %v1802, 0
          %1809 = vset.pattern.permute.xlu0 0
          %1810 = vperm.xlu0 %1809, %v1808
          %v1811 = vpop.permute.xlu0 %1810
          %v1813 = vmax.f32 %v1803, %v1811
          %v1814 = vmax.f32 %v1804, %v1811
          %v1815 = vmax.f32 %v1805, %v1811
          %v1816 = vmax.f32 %v1806, %v1811
          %s1817 = scalar_lea.vmem [#allocation2], 32
          %v1818 = vld [vmem:[%s1817] sm:$0xff]
          %v1819 = vld [vmem:[%s1817 + $0x8] sm:$0xff]
          %v1820 = vld [vmem:[%s1817 + $0x10] sm:$0xff]
          %v1821 = vld [vmem:[%s1817 + $0x18] sm:$0xff]
          %v1822 = vmax.f32 %v1818, %v1811
          %v1823 = vmax.f32 %v1819, %v1811
          %v1824 = vmax.f32 %v1820, %v1811
          %v1825 = vmax.f32 %v1821, %v1811
          %v1826 = vld [vmem:[%s3] sm:$0xff]
          %v1827 = vld [vmem:[%s3 + $0x8] sm:$0xff]
          %vm1828 = vcmask 261120
          %v1830 = vsel %vm1828, %v1826, 0
          %v1833 = vsel %vm1828, %v1827, 0
          %1835 = vmatpush.msra.mxu0 0.0
          %1836 = vmatpush.msra.mxu0 0.0
          %1837 = vmatpush.msra.mxu0 0.0
          %1838 = vmatpush.msra.mxu0 0.0
          %1839 = vmatpush.msra.mxu0 0.0
          %1840 = vmatpush.msra.mxu0 0.0
          %1841 = vmatpush.msra.mxu0 0.0
          %1842 = vmatpush.msra.mxu0 0.0
          %1843 = vmatpush.msra.mxu0 0.0
          %1844 = vmatpush.msra.mxu0 0.0
          %1845 = vmatpush.msra.mxu0 0.0
          %1846 = vmatpush.msra.mxu0 0.0
          %v1847 = vand.u32 %v1816, 4294901760
          %1848 = vmatpush.msra.mxu0 %v1847
          %v1849 = vand.u32 %v1815, 4294901760
          %1850 = vmatpush.msra.mxu0 %v1849
          %v1851 = vand.u32 %v1814, 4294901760
          %1852 = vmatpush.msra.mxu0 %v1851
          %v1853 = vand.u32 %v1813, 4294901760
          %1854 = vmatpush.msra.mxu0 %v1853
          %v1855 = vand.u32 %v1830, 4294901760
          %v1856 = vsub.f32 %v1830, %v1855
          %v1857 = vand.u32 %v1856, 4294901760
          %v1858 = vsub.f32 %v1856, %v1857
          %v1859 = vand.u32 %v1858, 4294901760
          %1860 = vmatmul.f32.gmra.mxu0 %v1859
          %v1861 = vpop.f32.mrf.mxu0
          %v1862 = vadd.f32 0.0, %v1861
          %v1863 = vand.u32 %v1833, 4294901760
          %v1864 = vsub.f32 %v1833, %v1863
          %v1865 = vand.u32 %v1864, 4294901760
          %v1866 = vsub.f32 %v1864, %v1865
          %v1867 = vand.u32 %v1866, 4294901760
          %1868 = vmatmul.f32.gmra.mxu0 %v1867
          %v1869 = vpop.f32.mrf.mxu0
          %v1870 = vadd.f32 0.0, %v1869
          %1871 = vdwg.mxu0
          %1872 = vmatpush.msra.mxu0 0.0
          %1873 = vmatpush.msra.mxu0 0.0
          %1874 = vmatpush.msra.mxu0 0.0
          %1875 = vmatpush.msra.mxu0 0.0
          %1876 = vmatpush.msra.mxu0 0.0
          %1877 = vmatpush.msra.mxu0 0.0
          %1878 = vmatpush.msra.mxu0 0.0
          %1879 = vmatpush.msra.mxu0 0.0
          %1880 = vmatpush.msra.mxu0 0.0
          %1881 = vmatpush.msra.mxu0 0.0
          %1882 = vmatpush.msra.mxu0 0.0
          %1883 = vmatpush.msra.mxu0 0.0
          %v1884 = vand.u32 %v1816, 4294901760
          %v1885 = vsub.f32 %v1816, %v1884
          %v1886 = vand.u32 %v1885, 4294901760
          %v1887 = vsub.f32 %v1885, %v1886
          %v1888 = vand.u32 %v1887, 4294901760
          %1889 = vmatpush.msra.mxu0 %v1888
          %v1890 = vand.u32 %v1815, 4294901760
          %v1891 = vsub.f32 %v1815, %v1890
          %v1892 = vand.u32 %v1891, 4294901760
          %v1893 = vsub.f32 %v1891, %v1892
          %v1894 = vand.u32 %v1893, 4294901760
          %1895 = vmatpush.msra.mxu0 %v1894
          %v1896 = vand.u32 %v1814, 4294901760
          %v1897 = vsub.f32 %v1814, %v1896
          %v1898 = vand.u32 %v1897, 4294901760
          %v1899 = vsub.f32 %v1897, %v1898
          %v1900 = vand.u32 %v1899, 4294901760
          %1901 = vmatpush.msra.mxu0 %v1900
          %v1902 = vand.u32 %v1813, 4294901760
          %v1903 = vsub.f32 %v1813, %v1902
          %v1904 = vand.u32 %v1903, 4294901760
          %v1905 = vsub.f32 %v1903, %v1904
          %v1906 = vand.u32 %v1905, 4294901760
          %1907 = vmatpush.msra.mxu0 %v1906
          %v1908 = vand.u32 %v1830, 4294901760
          %1909 = vmatmul.f32.gmra.mxu0 %v1908
          %v1910 = vpop.f32.mrf.mxu0
          %v1911 = vadd.f32 %v1862, %v1910
          %v1912 = vand.u32 %v1833, 4294901760
          %1913 = vmatmul.f32.gmra.mxu0 %v1912
          %v1914 = vpop.f32.mrf.mxu0
          %v1915 = vadd.f32 %v1870, %v1914
          %1916 = vdwg.mxu0
          %1917 = vmatpush.msra.mxu0 0.0
          %1918 = vmatpush.msra.mxu0 0.0
          %1919 = vmatpush.msra.mxu0 0.0
          %1920 = vmatpush.msra.mxu0 0.0
          %1921 = vmatpush.msra.mxu0 0.0
          %1922 = vmatpush.msra.mxu0 0.0
          %1923 = vmatpush.msra.mxu0 0.0
          %1924 = vmatpush.msra.mxu0 0.0
          %1925 = vmatpush.msra.mxu0 0.0
          %1926 = vmatpush.msra.mxu0 0.0
          %1927 = vmatpush.msra.mxu0 0.0
          %1928 = vmatpush.msra.mxu0 0.0
          %v1929 = vand.u32 %v1816, 4294901760
          %v1930 = vsub.f32 %v1816, %v1929
          %1931 = vmatpush.msra.mxu0 %v1930
          %v1932 = vand.u32 %v1815, 4294901760
          %v1933 = vsub.f32 %v1815, %v1932
          %1934 = vmatpush.msra.mxu0 %v1933
          %v1935 = vand.u32 %v1814, 4294901760
          %v1936 = vsub.f32 %v1814, %v1935
          %1937 = vmatpush.msra.mxu0 %v1936
          %v1938 = vand.u32 %v1813, 4294901760
          %v1939 = vsub.f32 %v1813, %v1938
          %1940 = vmatpush.msra.mxu0 %v1939
          %v1941 = vand.u32 %v1830, 4294901760
          %v1942 = vsub.f32 %v1830, %v1941
          %1943 = vmatmul.f32.gmra.mxu0 %v1942
          %v1944 = vpop.f32.mrf.mxu0
          %v1945 = vadd.f32 %v1911, %v1944
          %v1946 = vand.u32 %v1833, 4294901760
          %v1947 = vsub.f32 %v1833, %v1946
          %1948 = vmatmul.f32.gmra.mxu0 %v1947
          %v1949 = vpop.f32.mrf.mxu0
          %v1950 = vadd.f32 %v1915, %v1949
          %1951 = vdwg.mxu0
          %1952 = vmatpush.msra.mxu0 0.0
          %1953 = vmatpush.msra.mxu0 0.0
          %1954 = vmatpush.msra.mxu0 0.0
          %1955 = vmatpush.msra.mxu0 0.0
          %1956 = vmatpush.msra.mxu0 0.0
          %1957 = vmatpush.msra.mxu0 0.0
          %1958 = vmatpush.msra.mxu0 0.0
          %1959 = vmatpush.msra.mxu0 0.0
          %1960 = vmatpush.msra.mxu0 0.0
          %1961 = vmatpush.msra.mxu0 0.0
          %1962 = vmatpush.msra.mxu0 0.0
          %1963 = vmatpush.msra.mxu0 0.0
          %v1964 = vand.u32 %v1816, 4294901760
          %1965 = vmatpush.msra.mxu0 %v1964
          %v1966 = vand.u32 %v1815, 4294901760
          %1967 = vmatpush.msra.mxu0 %v1966
          %v1968 = vand.u32 %v1814, 4294901760
          %1969 = vmatpush.msra.mxu0 %v1968
          %v1970 = vand.u32 %v1813, 4294901760
          %1971 = vmatpush.msra.mxu0 %v1970
          %v1972 = vand.u32 %v1830, 4294901760
          %v1973 = vsub.f32 %v1830, %v1972
          %v1974 = vand.u32 %v1973, 4294901760
          %1975 = vmatmul.f32.gmra.mxu0 %v1974
          %v1976 = vpop.f32.mrf.mxu0
          %v1977 = vadd.f32 %v1945, %v1976
          %v1978 = vand.u32 %v1833, 4294901760
          %v1979 = vsub.f32 %v1833, %v1978
          %v1980 = vand.u32 %v1979, 4294901760
          %1981 = vmatmul.f32.gmra.mxu0 %v1980
          %v1982 = vpop.f32.mrf.mxu0
          %v1983 = vadd.f32 %v1950, %v1982
          %1984 = vdwg.mxu0
          %1985 = vmatpush.msra.mxu0 0.0
          %1986 = vmatpush.msra.mxu0 0.0
          %1987 = vmatpush.msra.mxu0 0.0
          %1988 = vmatpush.msra.mxu0 0.0
          %1989 = vmatpush.msra.mxu0 0.0
          %1990 = vmatpush.msra.mxu0 0.0
          %1991 = vmatpush.msra.mxu0 0.0
          %1992 = vmatpush.msra.mxu0 0.0
          %1993 = vmatpush.msra.mxu0 0.0
          %1994 = vmatpush.msra.mxu0 0.0
          %1995 = vmatpush.msra.mxu0 0.0
          %1996 = vmatpush.msra.mxu0 0.0
          %v1997 = vand.u32 %v1816, 4294901760
          %v1998 = vsub.f32 %v1816, %v1997
          %v1999 = vand.u32 %v1998, 4294901760
          %2000 = vmatpush.msra.mxu0 %v1999
          %v2001 = vand.u32 %v1815, 4294901760
          %v2002 = vsub.f32 %v1815, %v2001
          %v2003 = vand.u32 %v2002, 4294901760
          %2004 = vmatpush.msra.mxu0 %v2003
          %v2005 = vand.u32 %v1814, 4294901760
          %v2006 = vsub.f32 %v1814, %v2005
          %v2007 = vand.u32 %v2006, 4294901760
          %2008 = vmatpush.msra.mxu0 %v2007
          %v2009 = vand.u32 %v1813, 4294901760
          %v2010 = vsub.f32 %v1813, %v2009
          %v2011 = vand.u32 %v2010, 4294901760
          %2012 = vmatpush.msra.mxu0 %v2011
          %v2013 = vand.u32 %v1830, 4294901760
          %2014 = vmatmul.f32.gmra.mxu0 %v2013
          %v2015 = vpop.f32.mrf.mxu0
          %v2016 = vadd.f32 %v1977, %v2015
          %v2017 = vand.u32 %v1833, 4294901760
          %2018 = vmatmul.f32.gmra.mxu0 %v2017
          %v2019 = vpop.f32.mrf.mxu0
          %v2020 = vadd.f32 %v1983, %v2019
          %2021 = vdwg.mxu0
          %2022 = vmatpush.msra.mxu0 0.0
          %2023 = vmatpush.msra.mxu0 0.0
          %2024 = vmatpush.msra.mxu0 0.0
          %2025 = vmatpush.msra.mxu0 0.0
          %2026 = vmatpush.msra.mxu0 0.0
          %2027 = vmatpush.msra.mxu0 0.0
          %2028 = vmatpush.msra.mxu0 0.0
          %2029 = vmatpush.msra.mxu0 0.0
          %2030 = vmatpush.msra.mxu0 0.0
          %2031 = vmatpush.msra.mxu0 0.0
          %2032 = vmatpush.msra.mxu0 0.0
          %2033 = vmatpush.msra.mxu0 0.0
          %v2034 = vand.u32 %v1816, 4294901760
          %2035 = vmatpush.msra.mxu0 %v2034
          %v2036 = vand.u32 %v1815, 4294901760
          %2037 = vmatpush.msra.mxu0 %v2036
          %v2038 = vand.u32 %v1814, 4294901760
          %2039 = vmatpush.msra.mxu0 %v2038
          %v2040 = vand.u32 %v1813, 4294901760
          %2041 = vmatpush.msra.mxu0 %v2040
          %v2042 = vand.u32 %v1830, 4294901760
          %2043 = vmatmul.f32.gmra.mxu0 %v2042
          %v2044 = vpop.f32.mrf.mxu0
          %v2045 = vadd.f32 %v2016, %v2044
          %v2046 = vand.u32 %v1833, 4294901760
          %2047 = vmatmul.f32.gmra.mxu0 %v2046
          %v2048 = vpop.f32.mrf.mxu0
          %v2049 = vadd.f32 %v2020, %v2048
          %2050 = vdwg.mxu0
          %2051 = vmatpush.msra.mxu0 0.0
          %2052 = vmatpush.msra.mxu0 0.0
          %2053 = vmatpush.msra.mxu0 0.0
          %2054 = vmatpush.msra.mxu0 0.0
          %2055 = vmatpush.msra.mxu0 0.0
          %2056 = vmatpush.msra.mxu0 0.0
          %2057 = vmatpush.msra.mxu0 0.0
          %2058 = vmatpush.msra.mxu0 0.0
          %2059 = vmatpush.msra.mxu0 0.0
          %2060 = vmatpush.msra.mxu0 0.0
          %2061 = vmatpush.msra.mxu0 0.0
          %2062 = vmatpush.msra.mxu0 0.0
          %v2063 = vand.u32 %v1825, 4294901760
          %2064 = vmatpush.msra.mxu0 %v2063
          %v2065 = vand.u32 %v1824, 4294901760
          %2066 = vmatpush.msra.mxu0 %v2065
          %v2067 = vand.u32 %v1823, 4294901760
          %2068 = vmatpush.msra.mxu0 %v2067
          %v2069 = vand.u32 %v1822, 4294901760
          %2070 = vmatpush.msra.mxu0 %v2069
          %v2071 = vand.u32 %v1830, 4294901760
          %v2072 = vsub.f32 %v1830, %v2071
          %v2073 = vand.u32 %v2072, 4294901760
          %v2074 = vsub.f32 %v2072, %v2073
          %v2075 = vand.u32 %v2074, 4294901760
          %2076 = vmatmul.f32.gmra.mxu0 %v2075
          %v2077 = vpop.f32.mrf.mxu0
          %v2078 = vadd.f32 0.0, %v2077
          %v2079 = vand.u32 %v1833, 4294901760
          %v2080 = vsub.f32 %v1833, %v2079
          %v2081 = vand.u32 %v2080, 4294901760
          %v2082 = vsub.f32 %v2080, %v2081
          %v2083 = vand.u32 %v2082, 4294901760
          %2084 = vmatmul.f32.gmra.mxu0 %v2083
          %v2085 = vpop.f32.mrf.mxu0
          %v2086 = vadd.f32 0.0, %v2085
          %2087 = vdwg.mxu0
          %2088 = vmatpush.msra.mxu0 0.0
          %2089 = vmatpush.msra.mxu0 0.0
          %2090 = vmatpush.msra.mxu0 0.0
          %2091 = vmatpush.msra.mxu0 0.0
          %2092 = vmatpush.msra.mxu0 0.0
          %2093 = vmatpush.msra.mxu0 0.0
          %2094 = vmatpush.msra.mxu0 0.0
          %2095 = vmatpush.msra.mxu0 0.0
          %2096 = vmatpush.msra.mxu0 0.0
          %2097 = vmatpush.msra.mxu0 0.0
          %2098 = vmatpush.msra.mxu0 0.0
          %2099 = vmatpush.msra.mxu0 0.0
          %v2100 = vand.u32 %v1825, 4294901760
          %v2101 = vsub.f32 %v1825, %v2100
          %v2102 = vand.u32 %v2101, 4294901760
          %v2103 = vsub.f32 %v2101, %v2102
          %v2104 = vand.u32 %v2103, 4294901760
          %2105 = vmatpush.msra.mxu0 %v2104
          %v2106 = vand.u32 %v1824, 4294901760
          %v2107 = vsub.f32 %v1824, %v2106
          %v2108 = vand.u32 %v2107, 4294901760
          %v2109 = vsub.f32 %v2107, %v2108
          %v2110 = vand.u32 %v2109, 4294901760
          %2111 = vmatpush.msra.mxu0 %v2110
          %v2112 = vand.u32 %v1823, 4294901760
          %v2113 = vsub.f32 %v1823, %v2112
          %v2114 = vand.u32 %v2113, 4294901760
          %v2115 = vsub.f32 %v2113, %v2114
          %v2116 = vand.u32 %v2115, 4294901760
          %2117 = vmatpush.msra.mxu0 %v2116
          %v2118 = vand.u32 %v1822, 4294901760
          %v2119 = vsub.f32 %v1822, %v2118
          %v2120 = vand.u32 %v2119, 4294901760
          %v2121 = vsub.f32 %v2119, %v2120
          %v2122 = vand.u32 %v2121, 4294901760
          %2123 = vmatpush.msra.mxu0 %v2122
          %v2124 = vand.u32 %v1830, 4294901760
          %2125 = vmatmul.f32.gmra.mxu0 %v2124
          %v2126 = vpop.f32.mrf.mxu0
          %v2127 = vadd.f32 %v2078, %v2126
          %v2128 = vand.u32 %v1833, 4294901760
          %2129 = vmatmul.f32.gmra.mxu0 %v2128
          %v2130 = vpop.f32.mrf.mxu0
          %v2131 = vadd.f32 %v2086, %v2130
          %2132 = vdwg.mxu0
          %2133 = vmatpush.msra.mxu0 0.0
          %2134 = vmatpush.msra.mxu0 0.0
          %2135 = vmatpush.msra.mxu0 0.0
          %2136 = vmatpush.msra.mxu0 0.0
          %2137 = vmatpush.msra.mxu0 0.0
          %2138 = vmatpush.msra.mxu0 0.0
          %2139 = vmatpush.msra.mxu0 0.0
          %2140 = vmatpush.msra.mxu0 0.0
          %2141 = vmatpush.msra.mxu0 0.0
          %2142 = vmatpush.msra.mxu0 0.0
          %2143 = vmatpush.msra.mxu0 0.0
          %2144 = vmatpush.msra.mxu0 0.0
          %v2145 = vand.u32 %v1825, 4294901760
          %v2146 = vsub.f32 %v1825, %v2145
          %2147 = vmatpush.msra.mxu0 %v2146
          %v2148 = vand.u32 %v1824, 4294901760
          %v2149 = vsub.f32 %v1824, %v2148
          %2150 = vmatpush.msra.mxu0 %v2149
          %v2151 = vand.u32 %v1823, 4294901760
          %v2152 = vsub.f32 %v1823, %v2151
          %2153 = vmatpush.msra.mxu0 %v2152
          %v2154 = vand.u32 %v1822, 4294901760
          %v2155 = vsub.f32 %v1822, %v2154
          %2156 = vmatpush.msra.mxu0 %v2155
          %v2157 = vand.u32 %v1830, 4294901760
          %v2158 = vsub.f32 %v1830, %v2157
          %2159 = vmatmul.f32.gmra.mxu0 %v2158
          %v2160 = vpop.f32.mrf.mxu0
          %v2161 = vadd.f32 %v2127, %v2160
          %v2162 = vand.u32 %v1833, 4294901760
          %v2163 = vsub.f32 %v1833, %v2162
          %2164 = vmatmul.f32.gmra.mxu0 %v2163
          %v2165 = vpop.f32.mrf.mxu0
          %v2166 = vadd.f32 %v2131, %v2165
          %2167 = vdwg.mxu0
          %2168 = vmatpush.msra.mxu0 0.0
          %2169 = vmatpush.msra.mxu0 0.0
          %2170 = vmatpush.msra.mxu0 0.0
          %2171 = vmatpush.msra.mxu0 0.0
          %2172 = vmatpush.msra.mxu0 0.0
          %2173 = vmatpush.msra.mxu0 0.0
          %2174 = vmatpush.msra.mxu0 0.0
          %2175 = vmatpush.msra.mxu0 0.0
          %2176 = vmatpush.msra.mxu0 0.0
          %2177 = vmatpush.msra.mxu0 0.0
          %2178 = vmatpush.msra.mxu0 0.0
          %2179 = vmatpush.msra.mxu0 0.0
          %v2180 = vand.u32 %v1825, 4294901760
          %2181 = vmatpush.msra.mxu0 %v2180
          %v2182 = vand.u32 %v1824, 4294901760
          %2183 = vmatpush.msra.mxu0 %v2182
          %v2184 = vand.u32 %v1823, 4294901760
          %2185 = vmatpush.msra.mxu0 %v2184
          %v2186 = vand.u32 %v1822, 4294901760
          %2187 = vmatpush.msra.mxu0 %v2186
          %v2188 = vand.u32 %v1830, 4294901760
          %v2189 = vsub.f32 %v1830, %v2188
          %v2190 = vand.u32 %v2189, 4294901760
          %2191 = vmatmul.f32.gmra.mxu0 %v2190
          %v2192 = vpop.f32.mrf.mxu0
          %v2193 = vadd.f32 %v2161, %v2192
          %v2194 = vand.u32 %v1833, 4294901760
          %v2195 = vsub.f32 %v1833, %v2194
          %v2196 = vand.u32 %v2195, 4294901760
          %2197 = vmatmul.f32.gmra.mxu0 %v2196
          %v2198 = vpop.f32.mrf.mxu0
          %v2199 = vadd.f32 %v2166, %v2198
          %2200 = vdwg.mxu0
          %2201 = vmatpush.msra.mxu0 0.0
          %2202 = vmatpush.msra.mxu0 0.0
          %2203 = vmatpush.msra.mxu0 0.0
          %2204 = vmatpush.msra.mxu0 0.0
          %2205 = vmatpush.msra.mxu0 0.0
          %2206 = vmatpush.msra.mxu0 0.0
          %2207 = vmatpush.msra.mxu0 0.0
          %2208 = vmatpush.msra.mxu0 0.0
          %2209 = vmatpush.msra.mxu0 0.0
          %2210 = vmatpush.msra.mxu0 0.0
          %2211 = vmatpush.msra.mxu0 0.0
          %2212 = vmatpush.msra.mxu0 0.0
          %v2213 = vand.u32 %v1825, 4294901760
          %v2214 = vsub.f32 %v1825, %v2213
          %v2215 = vand.u32 %v2214, 4294901760
          %2216 = vmatpush.msra.mxu0 %v2215
          %v2217 = vand.u32 %v1824, 4294901760
          %v2218 = vsub.f32 %v1824, %v2217
          %v2219 = vand.u32 %v2218, 4294901760
          %2220 = vmatpush.msra.mxu0 %v2219
          %v2221 = vand.u32 %v1823, 4294901760
          %v2222 = vsub.f32 %v1823, %v2221
          %v2223 = vand.u32 %v2222, 4294901760
          %2224 = vmatpush.msra.mxu0 %v2223
          %v2225 = vand.u32 %v1822, 4294901760
          %v2226 = vsub.f32 %v1822, %v2225
          %v2227 = vand.u32 %v2226, 4294901760
          %2228 = vmatpush.msra.mxu0 %v2227
          %v2229 = vand.u32 %v1830, 4294901760
          %2230 = vmatmul.f32.gmra.mxu0 %v2229
          %v2231 = vpop.f32.mrf.mxu0
          %v2232 = vadd.f32 %v2193, %v2231
          %v2233 = vand.u32 %v1833, 4294901760
          %2234 = vmatmul.f32.gmra.mxu0 %v2233
          %v2235 = vpop.f32.mrf.mxu0
          %v2236 = vadd.f32 %v2199, %v2235
          %2237 = vdwg.mxu0
          %2238 = vmatpush.msra.mxu0 0.0
          %2239 = vmatpush.msra.mxu0 0.0
          %2240 = vmatpush.msra.mxu0 0.0
          %2241 = vmatpush.msra.mxu0 0.0
          %2242 = vmatpush.msra.mxu0 0.0
          %2243 = vmatpush.msra.mxu0 0.0
          %2244 = vmatpush.msra.mxu0 0.0
          %2245 = vmatpush.msra.mxu0 0.0
          %2246 = vmatpush.msra.mxu0 0.0
          %2247 = vmatpush.msra.mxu0 0.0
          %2248 = vmatpush.msra.mxu0 0.0
          %2249 = vmatpush.msra.mxu0 0.0
          %v2250 = vand.u32 %v1825, 4294901760
          %2251 = vmatpush.msra.mxu0 %v2250
          %v2252 = vand.u32 %v1824, 4294901760
          %2253 = vmatpush.msra.mxu0 %v2252
          %v2254 = vand.u32 %v1823, 4294901760
          %2255 = vmatpush.msra.mxu0 %v2254
          %v2256 = vand.u32 %v1822, 4294901760
          %2257 = vmatpush.msra.mxu0 %v2256
          %v2258 = vand.u32 %v1830, 4294901760
          %2259 = vmatmul.f32.gmra.mxu0 %v2258
          %v2260 = vpop.f32.mrf.mxu0
          %v2261 = vadd.f32 %v2232, %v2260
          %v2262 = vand.u32 %v1833, 4294901760
          %2263 = vmatmul.f32.gmra.mxu0 %v2262
          %v2264 = vpop.f32.mrf.mxu0
          %v2265 = vadd.f32 %v2236, %v2264
          %2266 = vdwg.mxu0
          %2267 = vst [vmem:[%s306] sm:$0xff] %v2045
          %2268 = vst [vmem:[%s306 + $0x8] sm:$0xff] %v2261
          %2269 = vst [vmem:[%s306 + $0x10] sm:$0xff] %v2049
          %2270 = vst [vmem:[%s306 + $0x18] sm:$0xff] %v2265
        $region82: #{mfcc_pallas.1} parent=69 // pred_fallthru
          _
        %s2271 = sand.u32 %s129, 1
        %s2272 = scalar_lea.sflag [#allocation6], %s2271
        %s2273 = sand.u32 %s129, 1
        %s2274 = smul.addr %s2273, 32
        %s2275 = scalar_lea.vmem [#allocation5], %s2274
        // Predicated region
        $region83: #{mfcc_pallas.1} parent=69 // pred_check
          %p2276 = pneg %p139
        $region84: #{mfcc_pallas.1} parent=69 // pred_check_branch
          %2278 = sbr.rel (%p2276) target = $region86
        $region85: #{mfcc_pallas.1} parent=69 // pred_region
          %2280 = vsyncadd %s2272, 0
          %s2281 = smul.addr %s22, 4
          %s2282 = smul.addr %s2281, 8
          %s2283 = scalar_lea.hbm %s4, %s2282
          %s2284 = sshll.u32 %s2275, 4
          %s2285 = int_to_ptr.vmem [resolvable:$true] %s2284
          %s2286 = sshll.u32 %s2283, 4
          %s2287 = int_to_ptr.hbm [resolvable:$true] %s2286
          %2292 = dma.vmem_to_hbm [thread:$0]  %s2285, 512, %s2287, %s2272, 256, 256, 16
        $region86: #{mfcc_pallas.1} parent=69 // pred_fallthru
          _
      $region70: #{mfcc_pallas.1} parent=5 // pred_fallthru
        _
      %p2293 = scmp.le.s32.totalorder 2, %s13
      // Predicated region
      $region87: #{mfcc_pallas.1} parent=5 // pred_check
        %p2294 = pneg %p2293
      $region88: #{mfcc_pallas.1} parent=5 // pred_check_branch
        %2296 = sbr.rel (%p2294) target = $region90
      $region89: #{mfcc_pallas.1} parent=5 // pred_region
        %s2297 = ssub.s32 %s13, 2
        // Predicated region
        $region91: #{mfcc_pallas.1} parent=89 // pred_check
          %p2298 = pneg %p145
        $region92: #{mfcc_pallas.1} parent=89 // pred_check_branch
          %2300 = sbr.rel (%p2298) target = $region94
        $region93: #{mfcc_pallas.1} parent=89 // pred_region
          %s2301 = sand.u32 %s130, 1
          %s2302 = scalar_lea.sflag [#allocation6], %s2301
          %s2303 = sand.u32 %s130, 1
          %s2304 = smul.addr %s2303, 32
          %s2305 = scalar_lea.vmem [#allocation5], %s2304
          %2307 = dma.done %s2302, 512
        $region94: #{mfcc_pallas.1} parent=89 // pred_fallthru
          _
      $region90: #{mfcc_pallas.1} parent=5 // pred_fallthru
        _
    $region6: #{mfcc_pallas.1} parent=1 // loop_footer
      %s17 = sadd.s32 1, %s13
    $region7: #{mfcc_pallas.1} parent=1 // loop_footer_branch
      %12 = sbr.rel target = $region3
    $region8: #{mfcc_pallas.1} parent=1 // loop_exit
      _
    %2308 = vsyncpa [#allocation6], 1
    %s2309 = scalar_lea.sflag [#allocation6], 1
    %2310 = vsyncpa %s2309, 1

</llo_original>
